<compile_context>
chip_gen: v7x
topology: tpu7x:2x2x1
jax: 0.10.0
libtpu: 0.0.40
codegen_flags: <defaults>
</compile_context>

<pallas_src>
import functools

import jax
import jax.numpy as jnp
from jax.experimental import pallas as pl
from jax.experimental.pallas import tpu as pltpu

_LANE = 128
_SUBLANE = 8


def _round_up(x, m):
    return ((x + m - 1) // m) * m


def _choose_batch_tile(B):
    """Pick a batch tile: sublane-aligned, <=12.5% pad waste, >=2 grid steps
    once the padded batch reaches 256 (v7x megacore), 128-granular when
    possible so MXU M-dim passes are full."""
    b8 = _round_up(B, _SUBLANE)
    if b8 < 256:
        return b8                                   # single small grid step
    for t in (512, 256, 128):                       # biggest tile first
        padded = _round_up(b8, t)
        if padded // t >= 2 and (padded - b8) * 8 <= padded:
            return t
    # Fallback: fewest (>=2) sublane-aligned steps of at most ~512 rows each.
    nsteps = max(2, -(-b8 // 512))
    return _round_up(-(-b8 // nsteps), _SUBLANE)


def _classifier_kernel(x_ref,
                       w1_ref, b1_ref,
                       w2_ref, b2_ref,
                       w3_ref, b3_ref,
                       w4_ref, b4_ref,
                       o_ref):
    """Fused 4-layer MLP for one batch tile.

    Matmuls run on the MXU with f32 accumulation; bias-add + ReLU on the VPU.
    Hidden activations are cast back to bf16 between layers so every MXU pass
    consumes narrow inputs; intermediates never leave vregs/VMEM.
    """
    cdt = w1_ref.dtype                       # bf16 compute dtype

    h = x_ref[...].astype(cdt)               # f32 -> bf16 cast inside kernel
    h = jnp.dot(h, w1_ref[...], preferred_element_type=jnp.float32)
    h = jnp.maximum(h + b1_ref[...], 0.0).astype(cdt)

    h = jnp.dot(h, w2_ref[...], preferred_element_type=jnp.float32)
    h = jnp.maximum(h + b2_ref[...], 0.0).astype(cdt)

    h = jnp.dot(h, w3_ref[...], preferred_element_type=jnp.float32)
    h = jnp.maximum(h + b3_ref[...], 0.0).astype(cdt)

    h = jnp.dot(h, w4_ref[...], preferred_element_type=jnp.float32)
    h = jnp.maximum(h + b4_ref[...], 0.0)

    o_ref[...] = h.astype(o_ref.dtype)


def prepare_params(params, *, compute_dtype=jnp.bfloat16):
    """One-time weight prep (call at init / after each param update, NOT per
    forward): cast weights to the compute dtype, keep biases f32 (added to the
    f32 accumulator), pad the last layer to a lane-dense 128-wide output."""
    out_dim = params["w4"].shape[1]
    out_pad = _round_up(out_dim, _LANE)
    prepped = {}
    for n in ("1", "2", "3", "4"):
        w = params[f"w{n}"].astype(compute_dtype)
        b = params[f"b{n}"].astype(jnp.float32)
        if n == "4" and out_pad != out_dim:
            w = jnp.pad(w, ((0, 0), (0, out_pad - out_dim)))
            b = jnp.pad(b, ((0, 0), (0, out_pad - out_dim)))
        prepped[f"w{n}"], prepped[f"b{n}"] = w, b
    return prepped


def classifier_forward(x, prepped, *, out_dim, batch_tile=None):
    """x: [B, input_size] float32.  prepped: output of prepare_params.
    out_dim: true (unpadded) output size.  Returns float32 [B, out_dim]."""
    B, in_dim = x.shape
    out_pad = prepped["w4"].shape[1]

    if batch_tile is None:
        batch_tile = _choose_batch_tile(B)
    b_pad = _round_up(B, batch_tile)
    if b_pad != B:
        x = jnp.pad(x, ((0, b_pad - B), (0, 0)))

    w1, b1 = prepped["w1"], prepped["b1"]
    w2, b2 = prepped["w2"], prepped["b2"]
    w3, b3 = prepped["w3"], prepped["b3"]
    w4, b4 = prepped["w4"], prepped["b4"]

    # Constant index maps -> weights/biases are DMA'd once and stay
    # VMEM-resident across all grid steps.
    def full_spec(arr):
        nd = arr.ndim
        return pl.BlockSpec(arr.shape, lambda i, _nd=nd: (0,) * _nd)

    grid = (b_pad // batch_tile,)

    h1, h2, h3 = 128, 256, 1024
    flops = 2 * b_pad * (in_dim * h1 + h1 * h2 + h2 * h3 + h3 * out_pad)
    weight_bytes = sum(int(a.size) * a.dtype.itemsize
                       for a in (w1, b1, w2, b2, w3, b3, w4, b4))
    bytes_accessed = (int(x.size) * x.dtype.itemsize + weight_bytes
                      + b_pad * out_pad * 4)
    cost = pl.CostEstimate(flops=int(flops), transcendentals=0,
                           bytes_accessed=int(bytes_accessed))

    compiler_kwargs = dict(dimension_semantics=("parallel",))
    if batch_tile >= 512:
        # v5e default scoped VMEM is 16 MiB; be explicit for big batch tiles
        # instead of trusting a hand-rolled estimate.
        compiler_kwargs["vmem_limit_bytes"] = 32 * 1024 * 1024

    out_padded = pl.pallas_call(
        _classifier_kernel,
        out_shape=jax.ShapeDtypeStruct((b_pad, out_pad), jnp.float32),
        grid_spec=pltpu.PrefetchScalarGridSpec(
            num_scalar_prefetch=0,
            grid=grid,
            in_specs=[
                pl.BlockSpec((batch_tile, in_dim), lambda i: (i, 0)),  # x tile
                full_spec(w1), full_spec(b1),
                full_spec(w2), full_spec(b2),
                full_spec(w3), full_spec(b3),
                full_spec(w4), full_spec(b4),
            ],
            out_specs=pl.BlockSpec((batch_tile, out_pad), lambda i: (i, 0)),
        ),
        compiler_params=pltpu.CompilerParams(**compiler_kwargs),
        cost_estimate=cost,
    )(x, w1, b1, w2, b2, w3, b3, w4, b4)

    return out_padded[:B, :out_dim]


def init_params(key, input_size, output_size):
    """Deterministic init mimicking PyTorch nn.Linear default:
    U(-1/sqrt(fan_in), 1/sqrt(fan_in)).  Weights stored [in, out]."""
    dims = [(input_size, 128), (128, 256), (256, 1024), (1024, output_size)]
    params = {}
    for (fan_in, fan_out), n in zip(dims, ("1", "2", "3", "4")):
        key, kw, kb = jax.random.split(key, 3)
        bound = 1.0 / jnp.sqrt(float(fan_in))
        params[f"w{n}"] = jax.random.uniform(
            kw, (fan_in, fan_out), jnp.float32, minval=-bound, maxval=bound)
        params[f"b{n}"] = jax.random.uniform(
            kb, (1, fan_out), jnp.float32, minval=-bound, maxval=bound)
    return params


def reference_forward(x, params, compute_dtype=jnp.bfloat16):
    """Plain-JAX reference applying the same bf16-input / f32-accumulate math."""
    h = x.astype(compute_dtype)
    for n in ("1", "2", "3", "4"):
        w = params[f"w{n}"].astype(compute_dtype)
        acc = jnp.dot(h, w, preferred_element_type=jnp.float32) + params[f"b{n}"]
        acc = jnp.maximum(acc, 0.0)
        h = acc if n == "4" else acc.astype(compute_dtype)
    return h


if __name__ == "__main__":
    input_size = 32
    output_size = 16
    batch = 16

    key = jax.random.PRNGKey(0)
    key, kx = jax.random.split(key)
    x = jax.random.normal(kx, (batch, input_size), jnp.float32)
    params = init_params(key, input_size, output_size)

    # One-time weight prep (bf16 cast + lane padding) -- NOT per forward call.
    prepped = prepare_params(params)

    fwd = jax.jit(functools.partial(classifier_forward, out_dim=output_size))

    # Small batch: single grid step covering the whole (sublane-aligned) batch.
    out = jax.block_until_ready(fwd(x, prepped))
    ref = reference_forward(x, params)
    assert out.shape == (batch, output_size)
    assert jnp.allclose(out, ref, atol=1e-2, rtol=1e-2), \
        "mismatch vs reference (small batch)"

    # Non-tile-multiple batch: 3 x 128-row tiles (zero pad waste, >=2 steps
    # so the parallel axis can shard across v7x's two TensorCores).
    key, kx2 = jax.random.split(key)
    x_big = jax.random.normal(kx2, (384, input_size), jnp.float32)
    out_big = jax.block_until_ready(fwd(x_big, prepped))
    ref_big = reference_forward(x_big, params)
    assert out_big.shape == (384, output_size)
    assert jnp.allclose(out_big, ref_big, atol=1e-2, rtol=1e-2), \
        "mismatch vs reference (tiled batch)"

    print("KERNEL_OK")
</pallas_src>

<mosaic_0001>
module attributes {stable_mosaic.version = 11 : i64} {
  func.func @_classifier_kernel(%arg0: i32, %arg1: memref<16x32xf32, #tpu.memory_space<vmem>>, %arg2: memref<32x128xbf16, #tpu.memory_space<vmem>>, %arg3: memref<1x128xf32, #tpu.memory_space<vmem>>, %arg4: memref<128x256xbf16, #tpu.memory_space<vmem>>, %arg5: memref<1x256xf32, #tpu.memory_space<vmem>>, %arg6: memref<256x1024xbf16, #tpu.memory_space<vmem>>, %arg7: memref<1x1024xf32, #tpu.memory_space<vmem>>, %arg8: memref<1024x128xbf16, #tpu.memory_space<vmem>>, %arg9: memref<1x128xf32, #tpu.memory_space<vmem>>, %arg10: memref<16x128xf32, #tpu.memory_space<vmem>>) attributes {dimension_semantics = [#tpu.dimension_semantics<parallel>], iteration_bounds = array<i64: 1>, scalar_prefetch = 0 : i64, scratch_operands = 0 : i64, tpu.core_type = #tpu.core_type<tc>, window_params = [{transform_indices = @transform_0, window_bounds = array<i64: 16, 32>}, {pipeline_mode = #tpu.pipeline_mode<synchronous>, transform_indices = @transform_1, window_bounds = array<i64: 32, 128>}, {pipeline_mode = #tpu.pipeline_mode<synchronous>, transform_indices = @transform_2, window_bounds = array<i64: 1, 128>}, {pipeline_mode = #tpu.pipeline_mode<synchronous>, transform_indices = @transform_3, window_bounds = array<i64: 128, 256>}, {pipeline_mode = #tpu.pipeline_mode<synchronous>, transform_indices = @transform_4, window_bounds = array<i64: 1, 256>}, {pipeline_mode = #tpu.pipeline_mode<synchronous>, transform_indices = @transform_5, window_bounds = array<i64: 256, 1024>}, {pipeline_mode = #tpu.pipeline_mode<synchronous>, transform_indices = @transform_6, window_bounds = array<i64: 1, 1024>}, {pipeline_mode = #tpu.pipeline_mode<synchronous>, transform_indices = @transform_7, window_bounds = array<i64: 1024, 128>}, {pipeline_mode = #tpu.pipeline_mode<synchronous>, transform_indices = @transform_8, window_bounds = array<i64: 1, 128>}, {transform_indices = @transform_9, window_bounds = array<i64: 16, 128>}]} {
    %c0 = arith.constant 0 : index
    %c0_0 = arith.constant 0 : index
    %0 = vector.load %arg1[%c0, %c0_0] : memref<16x32xf32, #tpu.memory_space<vmem>>, vector<16x32xf32>
    %1 = arith.truncf %0 : vector<16x32xf32> to vector<16x32xbf16>
    %c0_1 = arith.constant 0 : index
    %c0_2 = arith.constant 0 : index
    %2 = vector.load %arg2[%c0_1, %c0_2] : memref<32x128xbf16, #tpu.memory_space<vmem>>, vector<32x128xbf16>
    %cst = arith.constant dense<0.000000e+00> : vector<16x128xf32>
    %3 = tpu.matmul %1, %2, %cst {dimension_numbers = #tpu.dot_dimension_numbers<[1], [0], [0], [1], [0, 0, 1, 1], [], []>} : vector<16x32xbf16>, vector<32x128xbf16>, vector<16x128xf32> -> vector<16x128xf32>
    %c0_3 = arith.constant 0 : index
    %c0_4 = arith.constant 0 : index
    %4 = vector.load %arg3[%c0_3, %c0_4] : memref<1x128xf32, #tpu.memory_space<vmem>>, vector<1x128xf32>
    %5 = vector.broadcast %4 : vector<1x128xf32> to vector<16x128xf32>
    %6 = arith.addf %3, %5 : vector<16x128xf32>
    %cst_5 = arith.constant 0.000000e+00 : f32
    %7 = vector.broadcast %cst_5 : f32 to vector<16x128xf32>
    %8 = arith.maximumf %6, %7 : vector<16x128xf32>
    %9 = arith.truncf %8 : vector<16x128xf32> to vector<16x128xbf16>
    %c0_6 = arith.constant 0 : index
    %c0_7 = arith.constant 0 : index
    %10 = vector.load %arg4[%c0_6, %c0_7] : memref<128x256xbf16, #tpu.memory_space<vmem>>, vector<128x256xbf16>
    %cst_8 = arith.constant dense<0.000000e+00> : vector<16x256xf32>
    %11 = tpu.matmul %9, %10, %cst_8 {dimension_numbers = #tpu.dot_dimension_numbers<[1], [0], [0], [1], [0, 0, 1, 1], [], []>} : vector<16x128xbf16>, vector<128x256xbf16>, vector<16x256xf32> -> vector<16x256xf32>
    %c0_9 = arith.constant 0 : index
    %c0_10 = arith.constant 0 : index
    %12 = vector.load %arg5[%c0_9, %c0_10] : memref<1x256xf32, #tpu.memory_space<vmem>>, vector<1x256xf32>
    %13 = vector.broadcast %12 : vector<1x256xf32> to vector<16x256xf32>
    %14 = arith.addf %11, %13 : vector<16x256xf32>
    %cst_11 = arith.constant 0.000000e+00 : f32
    %15 = vector.broadcast %cst_11 : f32 to vector<16x256xf32>
    %16 = arith.maximumf %14, %15 : vector<16x256xf32>
    %17 = arith.truncf %16 : vector<16x256xf32> to vector<16x256xbf16>
    %c0_12 = arith.constant 0 : index
    %c0_13 = arith.constant 0 : index
    %18 = vector.load %arg6[%c0_12, %c0_13] : memref<256x1024xbf16, #tpu.memory_space<vmem>>, vector<256x1024xbf16>
    %cst_14 = arith.constant dense<0.000000e+00> : vector<16x1024xf32>
    %19 = tpu.matmul %17, %18, %cst_14 {dimension_numbers = #tpu.dot_dimension_numbers<[1], [0], [0], [1], [0, 0, 1, 1], [], []>} : vector<16x256xbf16>, vector<256x1024xbf16>, vector<16x1024xf32> -> vector<16x1024xf32>
    %c0_15 = arith.constant 0 : index
    %c0_16 = arith.constant 0 : index
    %20 = vector.load %arg7[%c0_15, %c0_16] : memref<1x1024xf32, #tpu.memory_space<vmem>>, vector<1x1024xf32>
    %21 = vector.broadcast %20 : vector<1x1024xf32> to vector<16x1024xf32>
    %22 = arith.addf %19, %21 : vector<16x1024xf32>
    %cst_17 = arith.constant 0.000000e+00 : f32
    %23 = vector.broadcast %cst_17 : f32 to vector<16x1024xf32>
    %24 = arith.maximumf %22, %23 : vector<16x1024xf32>
    %25 = arith.truncf %24 : vector<16x1024xf32> to vector<16x1024xbf16>
    %c0_18 = arith.constant 0 : index
    %c0_19 = arith.constant 0 : index
    %26 = vector.load %arg8[%c0_18, %c0_19] : memref<1024x128xbf16, #tpu.memory_space<vmem>>, vector<1024x128xbf16>
    %cst_20 = arith.constant dense<0.000000e+00> : vector<16x128xf32>
    %27 = tpu.matmul %25, %26, %cst_20 {dimension_numbers = #tpu.dot_dimension_numbers<[1], [0], [0], [1], [0, 0, 1, 1], [], []>} : vector<16x1024xbf16>, vector<1024x128xbf16>, vector<16x128xf32> -> vector<16x128xf32>
    %c0_21 = arith.constant 0 : index
    %c0_22 = arith.constant 0 : index
    %28 = vector.load %arg9[%c0_21, %c0_22] : memref<1x128xf32, #tpu.memory_space<vmem>>, vector<1x128xf32>
    %29 = vector.broadcast %28 : vector<1x128xf32> to vector<16x128xf32>
    %30 = arith.addf %27, %29 : vector<16x128xf32>
    %cst_23 = arith.constant 0.000000e+00 : f32
    %31 = vector.broadcast %cst_23 : f32 to vector<16x128xf32>
    %32 = arith.maximumf %30, %31 : vector<16x128xf32>
    %c0_24 = arith.constant 0 : index
    %c0_25 = arith.constant 0 : index
    %33 = vector.load %arg10[%c0_24, %c0_25] : memref<16x128xf32, #tpu.memory_space<vmem>>, vector<16x128xf32>
    tpu.vector_store %arg10[%c0_24, %c0_25], %32 {strides = array<i32>} : memref<16x128xf32, #tpu.memory_space<vmem>>, vector<16x128xf32>,
    return
  }
  func.func @transform_0(%arg0: i32) -> (i32, i32) {
    %c0_i32 = arith.constant 0 : i32
    %c0_i32_0 = arith.constant 0 : i32
    return %arg0, %c0_i32 : i32, i32
  }
  func.func @transform_1(%arg0: i32) -> (i32, i32) {
    %c0_i32 = arith.constant 0 : i32
    %c0_i32_0 = arith.constant 0 : i32
    %c0_i32_1 = arith.constant 0 : i32
    return %c0_i32, %c0_i32_0 : i32, i32
  }
  func.func @transform_2(%arg0: i32) -> (i32, i32) {
    %c0_i32 = arith.constant 0 : i32
    %c0_i32_0 = arith.constant 0 : i32
    %c0_i32_1 = arith.constant 0 : i32
    return %c0_i32, %c0_i32_0 : i32, i32
  }
  func.func @transform_3(%arg0: i32) -> (i32, i32) {
    %c0_i32 = arith.constant 0 : i32
    %c0_i32_0 = arith.constant 0 : i32
    %c0_i32_1 = arith.constant 0 : i32
    return %c0_i32, %c0_i32_0 : i32, i32
  }
  func.func @transform_4(%arg0: i32) -> (i32, i32) {
    %c0_i32 = arith.constant 0 : i32
    %c0_i32_0 = arith.constant 0 : i32
    %c0_i32_1 = arith.constant 0 : i32
    return %c0_i32, %c0_i32_0 : i32, i32
  }
  func.func @transform_5(%arg0: i32) -> (i32, i32) {
    %c0_i32 = arith.constant 0 : i32
    %c0_i32_0 = arith.constant 0 : i32
    %c0_i32_1 = arith.constant 0 : i32
    return %c0_i32, %c0_i32_0 : i32, i32
  }
  func.func @transform_6(%arg0: i32) -> (i32, i32) {
    %c0_i32 = arith.constant 0 : i32
    %c0_i32_0 = arith.constant 0 : i32
    %c0_i32_1 = arith.constant 0 : i32
    return %c0_i32, %c0_i32_0 : i32, i32
  }
  func.func @transform_7(%arg0: i32) -> (i32, i32) {
    %c0_i32 = arith.constant 0 : i32
    %c0_i32_0 = arith.constant 0 : i32
    %c0_i32_1 = arith.constant 0 : i32
    return %c0_i32, %c0_i32_0 : i32, i32
  }
  func.func @transform_8(%arg0: i32) -> (i32, i32) {
    %c0_i32 = arith.constant 0 : i32
    %c0_i32_0 = arith.constant 0 : i32
    %c0_i32_1 = arith.constant 0 : i32
    return %c0_i32, %c0_i32_0 : i32, i32
  }
  func.func @transform_9(%arg0: i32) -> (i32, i32) {
    %c0_i32 = arith.constant 0 : i32
    %c0_i32_0 = arith.constant 0 : i32
    return %arg0, %c0_i32 : i32, i32
  }
}

</mosaic_0001>

<llo_original>
// kernel: classifier_forward.1
$region0: #{classifier_forward.1}
  #allocation0 [shape = 'u32[]', space=smem, size = 0x4, offset = 0x4, fixed_abs, tag = 'smem constant byte address 0x4 - core index']
  #allocation1 [shape = 'u32[144,128]{1,0:T(1,128)}', space=vmem, size = 0x12000, scoped, tag = 'internal scratch']
  %s0 = inlined_call_operand.hbm [shape: f32[16,32], index: 0, kind: input, shape index: {}]
  %s1 = inlined_call_operand.vmem [shape: bf16[32,128], index: 1, kind: input, shape index: {}]
  %s2 = inlined_call_operand.hbm [shape: f32[1,128], index: 2, kind: input, shape index: {}]
  %s3 = inlined_call_operand.hbm [shape: bf16[128,256], index: 3, kind: input, shape index: {}]
  %s4 = inlined_call_operand.vmem [shape: f32[1,256], index: 4, kind: input, shape index: {}]
  %s5 = inlined_call_operand.hbm [shape: bf16[256,1024], index: 5, kind: input, shape index: {}]
  %s6 = inlined_call_operand.hbm [shape: f32[1,1024], index: 6, kind: input, shape index: {}]
  %s7 = inlined_call_operand.hbm [shape: bf16[1024,128], index: 7, kind: input, shape index: {}]
  %s8 = inlined_call_operand.hbm [shape: f32[1,128], index: 8, kind: input, shape index: {}]
  %s9 = inlined_call_operand.hbm [shape: f32[16,128], index: 9, kind: output, shape index: {}]
  %s10 = sld [smem:[#allocation0]]
  $region74: #{classifier_forward.1} parent=0
    _
  %s12 = ssub.s32 1, %s10
  %s13 = scalar_select 0, %s12, %s10
  $region1: #{classifier_forward.1} parent=0
    #allocation2 [shape = 'u8[8192]{0}', space=vmem, size = 0x2000, scoped, tag = 'input window, operand 0, single buffered']
    #allocation3 [shape = 's32[1]{0}', space=sflag, size = 0x4, scoped, tag = 'scoped memory for classifier_forward.1']
    #allocation4 [shape = 's32[1]{0}', space=sflag, size = 0x4, scoped, tag = 'scoped memory for classifier_forward.1']
    #allocation5 [shape = 'u8[512]{0}', space=vmem, size = 0x400, scoped, tag = 'input window, operand 2, single buffered']
    #allocation6 [shape = 's32[1]{0}', space=sflag, size = 0x4, scoped, tag = 'scoped memory for classifier_forward.1']
    #allocation7 [shape = 'u8[65536]{0}', space=vmem, size = 0x10000, scoped, tag = 'input window, operand 3, single buffered']
    #allocation8 [shape = 'u8[524288]{0}', space=vmem, size = 0x80000, scoped, tag = 'input window, operand 5, single buffered']
    #allocation9 [shape = 's32[1]{0}', space=sflag, size = 0x4, scoped, tag = 'scoped memory for classifier_forward.1']
    #allocation10 [shape = 'u8[4096]{0}', space=vmem, size = 0x1000, scoped, tag = 'input window, operand 6, single buffered']
    #allocation11 [shape = 'u8[262144]{0}', space=vmem, size = 0x40000, scoped, tag = 'input window, operand 7, single buffered']
    #allocation12 [shape = 's32[1]{0}', space=sflag, size = 0x4, scoped, tag = 'scoped memory for classifier_forward.1']
    #allocation13 [shape = 'u8[512]{0}', space=vmem, size = 0x400, scoped, tag = 'input window, operand 8, single buffered']
    #allocation14 [shape = 'u8[8192]{0}', space=vmem, size = 0x2000, scoped, tag = 'output window, operand 0, single buffered']
    %14 = vsyncpa [#allocation3], 0
    %15 = vsyncpa [#allocation6], 0
    %16 = vsyncpa [#allocation9], 0
    %17 = vsyncpa [#allocation12], 0
    %18 = vsyncpa [#allocation4], 0
    // Predicated region
    $region2: #{classifier_forward.1} parent=1 // pred_check
      _
    $region3: #{classifier_forward.1} parent=1 // pred_check_branch
      %20 = sbr.rel (0) target = $region5
    $region4: #{classifier_forward.1} parent=1 // pred_region
      %s22 = ssub.s32 256, 256
      %23 = vsyncadd [#allocation3], %s22
      %s24 = sshll.u32 [#allocation2], 4
      %s25 = int_to_ptr.vmem [resolvable:$true] %s24
      %30 = dma.hbm_to_vmem [thread:$0]  %s0, 256, %s25, [#allocation3], 128, 128, 8
    $region5: #{classifier_forward.1} parent=1 // pred_fallthru
      _
    // Predicated region
    $region6: #{classifier_forward.1} parent=1 // pred_check
      _
    $region7: #{classifier_forward.1} parent=1 // pred_check_branch
      %32 = sbr.rel (0) target = $region9
    $region8: #{classifier_forward.1} parent=1 // pred_region
      _
    $region9: #{classifier_forward.1} parent=1 // pred_fallthru
      _
    // Predicated region
    $region10: #{classifier_forward.1} parent=1 // pred_check
      _
    $region11: #{classifier_forward.1} parent=1 // pred_check_branch
      %34 = sbr.rel (0) target = $region13
    $region12: #{classifier_forward.1} parent=1 // pred_region
      %s36 = ssub.s32 16, 16
      %37 = vsyncadd [#allocation6], %s36
      %s39 = sshll.u32 [#allocation5], 4
      %s40 = int_to_ptr.vmem [resolvable:$true] %s39
      %42 = dma.hbm_to_vmem [thread:$0]  %s2, 16, %s40, [#allocation6]
    $region13: #{classifier_forward.1} parent=1 // pred_fallthru
      _
    // Predicated region
    $region14: #{classifier_forward.1} parent=1 // pred_check
      _
    $region15: #{classifier_forward.1} parent=1 // pred_check_branch
      %44 = sbr.rel (0) target = $region17
    $region16: #{classifier_forward.1} parent=1 // pred_region
      %s46 = ssub.s32 2048, 2048
      %47 = vsyncadd [#allocation6], %s46
      %s48 = sshll.u32 [#allocation7], 4
      %s49 = int_to_ptr.vmem [resolvable:$true] %s48
      %54 = dma.hbm_to_vmem [thread:$0]  %s3, 2048, %s49, [#allocation6], 128, 128, 8
    $region17: #{classifier_forward.1} parent=1 // pred_fallthru
      _
    // Predicated region
    $region18: #{classifier_forward.1} parent=1 // pred_check
      _
    $region19: #{classifier_forward.1} parent=1 // pred_check_branch
      %56 = sbr.rel (0) target = $region21
    $region20: #{classifier_forward.1} parent=1 // pred_region
      _
    $region21: #{classifier_forward.1} parent=1 // pred_fallthru
      _
    // Predicated region
    $region22: #{classifier_forward.1} parent=1 // pred_check
      _
    $region23: #{classifier_forward.1} parent=1 // pred_check_branch
      %58 = sbr.rel (0) target = $region25
    $region24: #{classifier_forward.1} parent=1 // pred_region
      %s60 = ssub.s32 16384, 16384
      %61 = vsyncadd [#allocation9], %s60
      %s62 = sshll.u32 [#allocation8], 4
      %s63 = int_to_ptr.vmem [resolvable:$true] %s62
      %68 = dma.hbm_to_vmem [thread:$0]  %s5, 16384, %s63, [#allocation9], 512, 512, 32
    $region25: #{classifier_forward.1} parent=1 // pred_fallthru
      _
    // Predicated region
    $region26: #{classifier_forward.1} parent=1 // pred_check
      _
    $region27: #{classifier_forward.1} parent=1 // pred_check_branch
      %70 = sbr.rel (0) target = $region29
    $region28: #{classifier_forward.1} parent=1 // pred_region
      %s72 = ssub.s32 128, 128
      %73 = vsyncadd [#allocation9], %s72
      %s75 = sshll.u32 [#allocation10], 4
      %s76 = int_to_ptr.vmem [resolvable:$true] %s75
      %78 = dma.hbm_to_vmem [thread:$0]  %s6, 128, %s76, [#allocation9]
    $region29: #{classifier_forward.1} parent=1 // pred_fallthru
      _
    // Predicated region
    $region30: #{classifier_forward.1} parent=1 // pred_check
      _
    $region31: #{classifier_forward.1} parent=1 // pred_check_branch
      %80 = sbr.rel (0) target = $region33
    $region32: #{classifier_forward.1} parent=1 // pred_region
      %s82 = ssub.s32 8192, 8192
      %83 = vsyncadd [#allocation12], %s82
      %s84 = sshll.u32 [#allocation11], 4
      %s85 = int_to_ptr.vmem [resolvable:$true] %s84
      %90 = dma.hbm_to_vmem [thread:$0]  %s7, 8192, %s85, [#allocation12], 64, 64, 4
    $region33: #{classifier_forward.1} parent=1 // pred_fallthru
      _
    // Predicated region
    $region34: #{classifier_forward.1} parent=1 // pred_check
      _
    $region35: #{classifier_forward.1} parent=1 // pred_check_branch
      %92 = sbr.rel (0) target = $region37
    $region36: #{classifier_forward.1} parent=1 // pred_region
      %s94 = ssub.s32 16, 16
      %95 = vsyncadd [#allocation12], %s94
      %s97 = sshll.u32 [#allocation13], 4
      %s98 = int_to_ptr.vmem [resolvable:$true] %s97
      %100 = dma.hbm_to_vmem [thread:$0]  %s8, 16, %s98, [#allocation12]
    $region37: #{classifier_forward.1} parent=1 // pred_fallthru
      _
    // Predicated region
    $region38: #{classifier_forward.1} parent=1 // pred_check
      _
    $region39: #{classifier_forward.1} parent=1 // pred_check_branch
      %102 = sbr.rel (0) target = $region41
    $region40: #{classifier_forward.1} parent=1 // pred_region
      %103 = dma.done [#allocation3], 256
    $region41: #{classifier_forward.1} parent=1 // pred_fallthru
      _
    // Predicated region
    $region42: #{classifier_forward.1} parent=1 // pred_check
      _
    $region43: #{classifier_forward.1} parent=1 // pred_check_branch
      %105 = sbr.rel (0) target = $region45
    $region44: #{classifier_forward.1} parent=1 // pred_region
      %106 = dma.done [#allocation6], 16
    $region45: #{classifier_forward.1} parent=1 // pred_fallthru
      _
    // Predicated region
    $region46: #{classifier_forward.1} parent=1 // pred_check
      _
    $region47: #{classifier_forward.1} parent=1 // pred_check_branch
      %108 = sbr.rel (0) target = $region49
    $region48: #{classifier_forward.1} parent=1 // pred_region
      %109 = dma.done [#allocation6], 2048
    $region49: #{classifier_forward.1} parent=1 // pred_fallthru
      _
    // Predicated region
    $region50: #{classifier_forward.1} parent=1 // pred_check
      _
    $region51: #{classifier_forward.1} parent=1 // pred_check_branch
      %111 = sbr.rel (0) target = $region53
    $region52: #{classifier_forward.1} parent=1 // pred_region
      %112 = dma.done [#allocation9], 16384
    $region53: #{classifier_forward.1} parent=1 // pred_fallthru
      _
    // Predicated region
    $region54: #{classifier_forward.1} parent=1 // pred_check
      _
    $region55: #{classifier_forward.1} parent=1 // pred_check_branch
      %114 = sbr.rel (0) target = $region57
    $region56: #{classifier_forward.1} parent=1 // pred_region
      %115 = dma.done [#allocation9], 128
    $region57: #{classifier_forward.1} parent=1 // pred_fallthru
      _
    // Predicated region
    $region58: #{classifier_forward.1} parent=1 // pred_check
      _
    $region59: #{classifier_forward.1} parent=1 // pred_check_branch
      %117 = sbr.rel (0) target = $region61
    $region60: #{classifier_forward.1} parent=1 // pred_region
      %118 = dma.done [#allocation12], 8192
    $region61: #{classifier_forward.1} parent=1 // pred_fallthru
      _
    // Predicated region
    $region62: #{classifier_forward.1} parent=1 // pred_check
      _
    $region63: #{classifier_forward.1} parent=1 // pred_check_branch
      %120 = sbr.rel (0) target = $region65
    $region64: #{classifier_forward.1} parent=1 // pred_region
      %121 = dma.done [#allocation12], 16
    $region65: #{classifier_forward.1} parent=1 // pred_fallthru
      _
    %v123 = vld [vmem:[#allocation2] sm:$0xff]
    %v124 = vld [vmem:[#allocation2 + $0x8] sm:$0xff]
    %v125 = vpack.c.bf16 %v124, %v123
    %v126 = vld [vmem:[%s1] sm:$0xf]
    %v127 = vld [vmem:[%s1 + $0x4] sm:$0xf]
    %v128 = vld [vmem:[%s1 + $0x8] sm:$0xf]
    %v129 = vld [vmem:[%s1 + $0xc] sm:$0xf]
    %v130 = vld [vmem:[#allocation5] sm:$0x1]
    %v132 = vlaneseq
    %v133 = vshrl.u32 %v132, 7
    %v134 = vsub.s32 0, %v133
    %v135 = vrot.slane %v130, %v134
    %v141 = vunpack.c.l.b16 %v126
    %v142 = vunpack.c.l.b16 %v127
    %v143 = vunpack.c.l.b16 %v128
    %v144 = vunpack.c.l.b16 %v129
    %v145 = vpack.c.b16 %v142, %v141
    %v146 = vpack.c.b16 %v144, %v143
    %vm149 = vcmask 261120
    %v151 = vsel %vm149, %v125, 0
    %153 = vmatprep.subr.bf16.mxu0 0
    %154 = vmatpush1.bf16.msra.mxu0 %v145
    %155 = vmatprep.subr.bf16.mxu0 0
    %156 = vmatpush1.bf16.msra.mxu0 %v146
    %157 = vmatprep.subr.bf16.mxu0 0
    %158 = vmatpush1.bf16.msra.mxu0 0
    %159 = vmatprep.subr.bf16.mxu0 0
    %160 = vmatpush1.bf16.msra.mxu0 0
    %161 = vmatprep.subr.bf16.mxu0 0
    %162 = vmatpush1.bf16.msra.mxu0 0
    %163 = vmatprep.subr.bf16.mxu0 0
    %164 = vmatpush1.bf16.msra.mxu0 0
    %165 = vmatprep.subr.bf16.mxu0 0
    %166 = vmatpush1.bf16.msra.mxu0 0
    %167 = vmatprep.subr.bf16.mxu0 0
    %168 = vmatpush1.bf16.msra.mxu0 0
    %169 = vmatprep.subr.bf16.mxu0 0
    %170 = vmatpush1.bf16.msra.mxu0 0
    %171 = vmatprep.subr.bf16.mxu0 0
    %172 = vmatpush1.bf16.msra.mxu0 0
    %173 = vmatprep.subr.bf16.mxu0 0
    %174 = vmatpush1.bf16.msra.mxu0 0
    %175 = vmatprep.subr.bf16.mxu0 0
    %176 = vmatpush1.bf16.msra.mxu0 0
    %177 = vmatprep.subr.bf16.mxu0 0
    %178 = vmatpush1.bf16.msra.mxu0 0
    %179 = vmatprep.subr.bf16.mxu0 0
    %180 = vmatpush1.bf16.msra.mxu0 0
    %181 = vmatprep.subr.bf16.mxu0 0
    %182 = vmatpush1.bf16.msra.mxu0 0
    %183 = vmatprep.subr.bf16.mxu0 0
    %184 = vmatpush1.bf16.msra.mxu0 0
    %185 = vmatprep.mubr.bf16.mxu0 0
    %186 = vmatmul.mubr.bf16.gmra.mrb[0].mxu0 %v151
    %v187 = vpop.f32.mrb[0].mxu0
    %v188 = vadd.f32 %v135, %v187
    %v189 = vpop.f32.mrb[0].mxu0
    %v190 = vpop.f32.mrb[0].mxu0
    %v191 = vadd.f32 %v135, %v190
    %v192 = vpop.f32.mrb[0].mxu0
    %193 = vdwg.mxu0
    %v194 = vmax.f32 %v188, 0.0
    %v195 = vmax.f32 %v191, 0.0
    %v196 = vpack.c.bf16 %v195, %v194
    %v197 = vld [vmem:[#allocation7] sm:$0xff]
    %v198 = vld [vmem:[#allocation7 + $0x8] sm:$0xff]
    %v199 = vld [vmem:[#allocation7 + $0x10] sm:$0xff]
    %v200 = vld [vmem:[#allocation7 + $0x18] sm:$0xff]
    %v201 = vld [vmem:[#allocation7 + $0x20] sm:$0xff]
    %v202 = vld [vmem:[#allocation7 + $0x28] sm:$0xff]
    %v203 = vld [vmem:[#allocation7 + $0x30] sm:$0xff]
    %v204 = vld [vmem:[#allocation7 + $0x38] sm:$0xff]
    %v205 = vld [vmem:[#allocation7 + $0x40] sm:$0xff]
    %v206 = vld [vmem:[#allocation7 + $0x48] sm:$0xff]
    %v207 = vld [vmem:[#allocation7 + $0x50] sm:$0xff]
    %v208 = vld [vmem:[#allocation7 + $0x58] sm:$0xff]
    %v209 = vld [vmem:[#allocation7 + $0x60] sm:$0xff]
    %v210 = vld [vmem:[#allocation7 + $0x68] sm:$0xff]
    %v211 = vld [vmem:[#allocation7 + $0x70] sm:$0xff]
    %v212 = vld [vmem:[#allocation7 + $0x78] sm:$0xff]
    %v213 = vld [vmem:[%s4] sm:$0x3]
    %v215 = vlaneseq
    %v216 = vshrl.u32 %v215, 7
    %v217 = vsub.s32 0, %v216
    %v218 = vrot.slane %v213, %v217
    %v219 = vlaneseq
    %v220 = vshrl.u32 %v219, 7
    %v221 = vsub.s32 1, %v220
    %v222 = vrot.slane %v213, %v221
    %v241 = vunpack.c.l.b16 %v197
    %v242 = vunpack.c.h.b16 %v197
    %v243 = vunpack.c.l.b16 %v198
    %v244 = vunpack.c.h.b16 %v198
    %v245 = vunpack.c.l.b16 %v199
    %v246 = vunpack.c.h.b16 %v199
    %v247 = vunpack.c.l.b16 %v200
    %v248 = vunpack.c.h.b16 %v200
    %v249 = vunpack.c.l.b16 %v201
    %v250 = vunpack.c.h.b16 %v201
    %v251 = vunpack.c.l.b16 %v202
    %v252 = vunpack.c.h.b16 %v202
    %v253 = vunpack.c.l.b16 %v203
    %v254 = vunpack.c.h.b16 %v203
    %v255 = vunpack.c.l.b16 %v204
    %v256 = vunpack.c.h.b16 %v204
    %v257 = vunpack.c.l.b16 %v205
    %v258 = vunpack.c.h.b16 %v205
    %v259 = vunpack.c.l.b16 %v206
    %v260 = vunpack.c.h.b16 %v206
    %v261 = vunpack.c.l.b16 %v207
    %v262 = vunpack.c.h.b16 %v207
    %v263 = vunpack.c.l.b16 %v208
    %v264 = vunpack.c.h.b16 %v208
    %v265 = vunpack.c.l.b16 %v209
    %v266 = vunpack.c.h.b16 %v209
    %v267 = vunpack.c.l.b16 %v210
    %v268 = vunpack.c.h.b16 %v210
    %v269 = vunpack.c.l.b16 %v211
    %v270 = vunpack.c.h.b16 %v211
    %v271 = vunpack.c.l.b16 %v212
    %v272 = vunpack.c.h.b16 %v212
    %v273 = vpack.c.b16 %v243, %v241
    %v274 = vpack.c.b16 %v244, %v242
    %v275 = vpack.c.b16 %v247, %v245
    %v276 = vpack.c.b16 %v248, %v246
    %v277 = vpack.c.b16 %v251, %v249
    %v278 = vpack.c.b16 %v252, %v250
    %v279 = vpack.c.b16 %v255, %v253
    %v280 = vpack.c.b16 %v256, %v254
    %v281 = vpack.c.b16 %v259, %v257
    %v282 = vpack.c.b16 %v260, %v258
    %v283 = vpack.c.b16 %v263, %v261
    %v284 = vpack.c.b16 %v264, %v262
    %v285 = vpack.c.b16 %v267, %v265
    %v286 = vpack.c.b16 %v268, %v266
    %v287 = vpack.c.b16 %v271, %v269
    %v288 = vpack.c.b16 %v272, %v270
    %305 = vmatprep.subr.bf16.mxu0 %v274
    %306 = vmatpush1.bf16.msra.mxu0 %v273
    %307 = vmatprep.subr.bf16.mxu0 %v276
    %308 = vmatpush1.bf16.msra.mxu0 %v275
    %309 = vmatprep.subr.bf16.mxu0 %v278
    %310 = vmatpush1.bf16.msra.mxu0 %v277
    %311 = vmatprep.subr.bf16.mxu0 %v280
    %312 = vmatpush1.bf16.msra.mxu0 %v279
    %313 = vmatprep.subr.bf16.mxu0 %v282
    %314 = vmatpush1.bf16.msra.mxu0 %v281
    %315 = vmatprep.subr.bf16.mxu0 %v284
    %316 = vmatpush1.bf16.msra.mxu0 %v283
    %317 = vmatprep.subr.bf16.mxu0 %v286
    %318 = vmatpush1.bf16.msra.mxu0 %v285
    %319 = vmatprep.subr.bf16.mxu0 %v288
    %320 = vmatpush1.bf16.msra.mxu0 %v287
    %321 = vmatprep.subr.bf16.mxu0 0
    %322 = vmatpush1.bf16.msra.mxu0 0
    %323 = vmatprep.subr.bf16.mxu0 0
    %324 = vmatpush1.bf16.msra.mxu0 0
    %325 = vmatprep.subr.bf16.mxu0 0
    %326 = vmatpush1.bf16.msra.mxu0 0
    %327 = vmatprep.subr.bf16.mxu0 0
    %328 = vmatpush1.bf16.msra.mxu0 0
    %329 = vmatprep.subr.bf16.mxu0 0
    %330 = vmatpush1.bf16.msra.mxu0 0
    %331 = vmatprep.subr.bf16.mxu0 0
    %332 = vmatpush1.bf16.msra.mxu0 0
    %333 = vmatprep.subr.bf16.mxu0 0
    %334 = vmatpush1.bf16.msra.mxu0 0
    %335 = vmatprep.subr.bf16.mxu0 0
    %336 = vmatpush1.bf16.msra.mxu0 0
    %337 = vmatprep.mubr.bf16.mxu0 0
    %338 = vmatmul.mubr.bf16.gmra.mrb[0].mxu0 %v196
    %v339 = vpop.f32.mrb[0].mxu0
    %v340 = vadd.f32 %v218, %v339
    %v341 = vpop.f32.mrb[0].mxu0
    %v342 = vadd.f32 %v222, %v341
    %v343 = vpop.f32.mrb[0].mxu0
    %v344 = vadd.f32 %v218, %v343
    %v345 = vpop.f32.mrb[0].mxu0
    %v346 = vadd.f32 %v222, %v345
    %347 = vdwg.mxu0
    %v348 = vmax.f32 %v340, 0.0
    %v349 = vmax.f32 %v342, 0.0
    %v350 = vmax.f32 %v344, 0.0
    %v351 = vmax.f32 %v346, 0.0
    %v352 = vpack.c.bf16 %v350, %v348
    %v353 = vpack.c.bf16 %v351, %v349
    %v354 = vld [vmem:[#allocation8] sm:$0xff]
    %v355 = vld [vmem:[#allocation8 + $0x8] sm:$0xff]
    %v356 = vld [vmem:[#allocation8 + $0x10] sm:$0xff]
    %v357 = vld [vmem:[#allocation8 + $0x18] sm:$0xff]
    %v358 = vld [vmem:[#allocation8 + $0x20] sm:$0xff]
    %v359 = vld [vmem:[#allocation8 + $0x28] sm:$0xff]
    %v360 = vld [vmem:[#allocation8 + $0x30] sm:$0xff]
    %v361 = vld [vmem:[#allocation8 + $0x38] sm:$0xff]
    %v362 = vld [vmem:[#allocation8 + $0x40] sm:$0xff]
    %v363 = vld [vmem:[#allocation8 + $0x48] sm:$0xff]
    %v364 = vld [vmem:[#allocation8 + $0x50] sm:$0xff]
    %v365 = vld [vmem:[#allocation8 + $0x58] sm:$0xff]
    %v366 = vld [vmem:[#allocation8 + $0x60] sm:$0xff]
    %v367 = vld [vmem:[#allocation8 + $0x68] sm:$0xff]
    %v368 = vld [vmem:[#allocation8 + $0x70] sm:$0xff]
    %v369 = vld [vmem:[#allocation8 + $0x78] sm:$0xff]
    %v370 = vld [vmem:[#allocation8 + $0x80] sm:$0xff]
    %v371 = vld [vmem:[#allocation8 + $0x88] sm:$0xff]
    %v372 = vld [vmem:[#allocation8 + $0x90] sm:$0xff]
    %v373 = vld [vmem:[#allocation8 + $0x98] sm:$0xff]
    %v374 = vld [vmem:[#allocation8 + $0xa0] sm:$0xff]
    %v375 = vld [vmem:[#allocation8 + $0xa8] sm:$0xff]
    %v376 = vld [vmem:[#allocation8 + $0xb0] sm:$0xff]
    %v377 = vld [vmem:[#allocation8 + $0xb8] sm:$0xff]
    %v378 = vld [vmem:[#allocation8 + $0xc0] sm:$0xff]
    %v379 = vld [vmem:[#allocation8 + $0xc8] sm:$0xff]
    %v380 = vld [vmem:[#allocation8 + $0xd0] sm:$0xff]
    %v381 = vld [vmem:[#allocation8 + $0xd8] sm:$0xff]
    %v382 = vld [vmem:[#allocation8 + $0xe0] sm:$0xff]
    %v383 = vld [vmem:[#allocation8 + $0xe8] sm:$0xff]
    %v384 = vld [vmem:[#allocation8 + $0xf0] sm:$0xff]
    %v385 = vld [vmem:[#allocation8 + $0xf8] sm:$0xff]
    %v386 = vld [vmem:[#allocation8 + $0x100] sm:$0xff]
    %v387 = vld [vmem:[#allocation8 + $0x108] sm:$0xff]
    %v388 = vld [vmem:[#allocation8 + $0x110] sm:$0xff]
    %v389 = vld [vmem:[#allocation8 + $0x118] sm:$0xff]
    %v390 = vld [vmem:[#allocation8 + $0x120] sm:$0xff]
    %v391 = vld [vmem:[#allocation8 + $0x128] sm:$0xff]
    %v392 = vld [vmem:[#allocation8 + $0x130] sm:$0xff]
    %v393 = vld [vmem:[#allocation8 + $0x138] sm:$0xff]
    %v394 = vld [vmem:[#allocation8 + $0x140] sm:$0xff]
    %v395 = vld [vmem:[#allocation8 + $0x148] sm:$0xff]
    %v396 = vld [vmem:[#allocation8 + $0x150] sm:$0xff]
    %v397 = vld [vmem:[#allocation8 + $0x158] sm:$0xff]
    %v398 = vld [vmem:[#allocation8 + $0x160] sm:$0xff]
    %v399 = vld [vmem:[#allocation8 + $0x168] sm:$0xff]
    %v400 = vld [vmem:[#allocation8 + $0x170] sm:$0xff]
    %v401 = vld [vmem:[#allocation8 + $0x178] sm:$0xff]
    %v402 = vld [vmem:[#allocation8 + $0x180] sm:$0xff]
    %v403 = vld [vmem:[#allocation8 + $0x188] sm:$0xff]
    %v404 = vld [vmem:[#allocation8 + $0x190] sm:$0xff]
    %v405 = vld [vmem:[#allocation8 + $0x198] sm:$0xff]
    %v406 = vld [vmem:[#allocation8 + $0x1a0] sm:$0xff]
    %v407 = vld [vmem:[#allocation8 + $0x1a8] sm:$0xff]
    %v408 = vld [vmem:[#allocation8 + $0x1b0] sm:$0xff]
    %v409 = vld [vmem:[#allocation8 + $0x1b8] sm:$0xff]
    %v410 = vld [vmem:[#allocation8 + $0x1c0] sm:$0xff]
    %v411 = vld [vmem:[#allocation8 + $0x1c8] sm:$0xff]
    %v412 = vld [vmem:[#allocation8 + $0x1d0] sm:$0xff]
    %v413 = vld [vmem:[#allocation8 + $0x1d8] sm:$0xff]
    %v414 = vld [vmem:[#allocation8 + $0x1e0] sm:$0xff]
    %v415 = vld [vmem:[#allocation8 + $0x1e8] sm:$0xff]
    %v416 = vld [vmem:[#allocation8 + $0x1f0] sm:$0xff]
    %v417 = vld [vmem:[#allocation8 + $0x1f8] sm:$0xff]
    %v418 = vld [vmem:[#allocation8 + $0x200] sm:$0xff]
    %v419 = vld [vmem:[#allocation8 + $0x208] sm:$0xff]
    %v420 = vld [vmem:[#allocation8 + $0x210] sm:$0xff]
    %v421 = vld [vmem:[#allocation8 + $0x218] sm:$0xff]
    %v422 = vld [vmem:[#allocation8 + $0x220] sm:$0xff]
    %v423 = vld [vmem:[#allocation8 + $0x228] sm:$0xff]
    %v424 = vld [vmem:[#allocation8 + $0x230] sm:$0xff]
    %v425 = vld [vmem:[#allocation8 + $0x238] sm:$0xff]
    %v426 = vld [vmem:[#allocation8 + $0x240] sm:$0xff]
    %v427 = vld [vmem:[#allocation8 + $0x248] sm:$0xff]
    %v428 = vld [vmem:[#allocation8 + $0x250] sm:$0xff]
    %v429 = vld [vmem:[#allocation8 + $0x258] sm:$0xff]
    %v430 = vld [vmem:[#allocation8 + $0x260] sm:$0xff]
    %v431 = vld [vmem:[#allocation8 + $0x268] sm:$0xff]
    %v432 = vld [vmem:[#allocation8 + $0x270] sm:$0xff]
    %v433 = vld [vmem:[#allocation8 + $0x278] sm:$0xff]
    %v434 = vld [vmem:[#allocation8 + $0x280] sm:$0xff]
    %v435 = vld [vmem:[#allocation8 + $0x288] sm:$0xff]
    %v436 = vld [vmem:[#allocation8 + $0x290] sm:$0xff]
    %v437 = vld [vmem:[#allocation8 + $0x298] sm:$0xff]
    %v438 = vld [vmem:[#allocation8 + $0x2a0] sm:$0xff]
    %v439 = vld [vmem:[#allocation8 + $0x2a8] sm:$0xff]
    %v440 = vld [vmem:[#allocation8 + $0x2b0] sm:$0xff]
    %v441 = vld [vmem:[#allocation8 + $0x2b8] sm:$0xff]
    %v442 = vld [vmem:[#allocation8 + $0x2c0] sm:$0xff]
    %v443 = vld [vmem:[#allocation8 + $0x2c8] sm:$0xff]
    %v444 = vld [vmem:[#allocation8 + $0x2d0] sm:$0xff]
    %v445 = vld [vmem:[#allocation8 + $0x2d8] sm:$0xff]
    %v446 = vld [vmem:[#allocation8 + $0x2e0] sm:$0xff]
    %v447 = vld [vmem:[#allocation8 + $0x2e8] sm:$0xff]
    %v448 = vld [vmem:[#allocation8 + $0x2f0] sm:$0xff]
    %v449 = vld [vmem:[#allocation8 + $0x2f8] sm:$0xff]
    %v450 = vld [vmem:[#allocation8 + $0x300] sm:$0xff]
    %v451 = vld [vmem:[#allocation8 + $0x308] sm:$0xff]
    %v452 = vld [vmem:[#allocation8 + $0x310] sm:$0xff]
    %v453 = vld [vmem:[#allocation8 + $0x318] sm:$0xff]
    %v454 = vld [vmem:[#allocation8 + $0x320] sm:$0xff]
    %v455 = vld [vmem:[#allocation8 + $0x328] sm:$0xff]
    %v456 = vld [vmem:[#allocation8 + $0x330] sm:$0xff]
    %v457 = vld [vmem:[#allocation8 + $0x338] sm:$0xff]
    %v458 = vld [vmem:[#allocation8 + $0x340] sm:$0xff]
    %v459 = vld [vmem:[#allocation8 + $0x348] sm:$0xff]
    %v460 = vld [vmem:[#allocation8 + $0x350] sm:$0xff]
    %v461 = vld [vmem:[#allocation8 + $0x358] sm:$0xff]
    %v462 = vld [vmem:[#allocation8 + $0x360] sm:$0xff]
    %v463 = vld [vmem:[#allocation8 + $0x368] sm:$0xff]
    %v464 = vld [vmem:[#allocation8 + $0x370] sm:$0xff]
    %v465 = vld [vmem:[#allocation8 + $0x378] sm:$0xff]
    %v466 = vld [vmem:[#allocation8 + $0x380] sm:$0xff]
    %v467 = vld [vmem:[#allocation8 + $0x388] sm:$0xff]
    %v468 = vld [vmem:[#allocation8 + $0x390] sm:$0xff]
    %v469 = vld [vmem:[#allocation8 + $0x398] sm:$0xff]
    %v470 = vld [vmem:[#allocation8 + $0x3a0] sm:$0xff]
    %v471 = vld [vmem:[#allocation8 + $0x3a8] sm:$0xff]
    %v472 = vld [vmem:[#allocation8 + $0x3b0] sm:$0xff]
    %v473 = vld [vmem:[#allocation8 + $0x3b8] sm:$0xff]
    %v474 = vld [vmem:[#allocation8 + $0x3c0] sm:$0xff]
    %v475 = vld [vmem:[#allocation8 + $0x3c8] sm:$0xff]
    %v476 = vld [vmem:[#allocation8 + $0x3d0] sm:$0xff]
    %v477 = vld [vmem:[#allocation8 + $0x3d8] sm:$0xff]
    %v478 = vld [vmem:[#allocation8 + $0x3e0] sm:$0xff]
    %v479 = vld [vmem:[#allocation8 + $0x3e8] sm:$0xff]
    %v480 = vld [vmem:[#allocation8 + $0x3f0] sm:$0xff]
    %v481 = vld [vmem:[#allocation8 + $0x3f8] sm:$0xff]
    %v482 = vld [vmem:[#allocation10] sm:$0xff]
    %v484 = vlaneseq
    %v485 = vshrl.u32 %v484, 7
    %v486 = vsub.s32 0, %v485
    %v487 = vrot.slane %v482, %v486
    %v488 = vlaneseq
    %v489 = vshrl.u32 %v488, 7
    %v490 = vsub.s32 1, %v489
    %v491 = vrot.slane %v482, %v490
    %v492 = vlaneseq
    %v493 = vshrl.u32 %v492, 7
    %v494 = vsub.s32 2, %v493
    %v495 = vrot.slane %v482, %v494
    %v496 = vlaneseq
    %v497 = vshrl.u32 %v496, 7
    %v498 = vsub.s32 3, %v497
    %v499 = vrot.slane %v482, %v498
    %v500 = vlaneseq
    %v501 = vshrl.u32 %v500, 7
    %v502 = vsub.s32 4, %v501
    %v503 = vrot.slane %v482, %v502
    %v504 = vlaneseq
    %v505 = vshrl.u32 %v504, 7
    %v506 = vsub.s32 5, %v505
    %v507 = vrot.slane %v482, %v506
    %v508 = vlaneseq
    %v509 = vshrl.u32 %v508, 7
    %v510 = vsub.s32 6, %v509
    %v511 = vrot.slane %v482, %v510
    %v512 = vlaneseq
    %v513 = vshrl.u32 %v512, 7
    %v514 = vsub.s32 7, %v513
    %v515 = vrot.slane %v482, %v514
    %v652 = vunpack.c.l.b16 %v354
    %v653 = vunpack.c.h.b16 %v354
    %v654 = vunpack.c.l.b16 %v355
    %v655 = vunpack.c.h.b16 %v355
    %v656 = vunpack.c.l.b16 %v356
    %v657 = vunpack.c.h.b16 %v356
    %v658 = vunpack.c.l.b16 %v357
    %v659 = vunpack.c.h.b16 %v357
    %v660 = vunpack.c.l.b16 %v358
    %v661 = vunpack.c.h.b16 %v358
    %v662 = vunpack.c.l.b16 %v359
    %v663 = vunpack.c.h.b16 %v359
    %v664 = vunpack.c.l.b16 %v360
    %v665 = vunpack.c.h.b16 %v360
    %v666 = vunpack.c.l.b16 %v361
    %v667 = vunpack.c.h.b16 %v361
    %v668 = vunpack.c.l.b16 %v362
    %v669 = vunpack.c.h.b16 %v362
    %v670 = vunpack.c.l.b16 %v363
    %v671 = vunpack.c.h.b16 %v363
    %v672 = vunpack.c.l.b16 %v364
    %v673 = vunpack.c.h.b16 %v364
    %v674 = vunpack.c.l.b16 %v365
    %v675 = vunpack.c.h.b16 %v365
    %v676 = vunpack.c.l.b16 %v366
    %v677 = vunpack.c.h.b16 %v366
    %v678 = vunpack.c.l.b16 %v367
    %v679 = vunpack.c.h.b16 %v367
    %v680 = vunpack.c.l.b16 %v368
    %v681 = vunpack.c.h.b16 %v368
    %v682 = vunpack.c.l.b16 %v369
    %v683 = vunpack.c.h.b16 %v369
    %v684 = vunpack.c.l.b16 %v370
    %v685 = vunpack.c.h.b16 %v370
    %v686 = vunpack.c.l.b16 %v371
    %v687 = vunpack.c.h.b16 %v371
    %v688 = vunpack.c.l.b16 %v372
    %v689 = vunpack.c.h.b16 %v372
    %v690 = vunpack.c.l.b16 %v373
    %v691 = vunpack.c.h.b16 %v373
    %v692 = vunpack.c.l.b16 %v374
    %v693 = vunpack.c.h.b16 %v374
    %v694 = vunpack.c.l.b16 %v375
    %v695 = vunpack.c.h.b16 %v375
    %v696 = vunpack.c.l.b16 %v376
    %v697 = vunpack.c.h.b16 %v376
    %v698 = vunpack.c.l.b16 %v377
    %v699 = vunpack.c.h.b16 %v377
    %v700 = vunpack.c.l.b16 %v378
    %v701 = vunpack.c.h.b16 %v378
    %v702 = vunpack.c.l.b16 %v379
    %v703 = vunpack.c.h.b16 %v379
    %v704 = vunpack.c.l.b16 %v380
    %v705 = vunpack.c.h.b16 %v380
    %v706 = vunpack.c.l.b16 %v381
    %v707 = vunpack.c.h.b16 %v381
    %v708 = vunpack.c.l.b16 %v382
    %v709 = vunpack.c.h.b16 %v382
    %v710 = vunpack.c.l.b16 %v383
    %v711 = vunpack.c.h.b16 %v383
    %v712 = vunpack.c.l.b16 %v384
    %v713 = vunpack.c.h.b16 %v384
    %v714 = vunpack.c.l.b16 %v385
    %v715 = vunpack.c.h.b16 %v385
    %v716 = vunpack.c.l.b16 %v386
    %v717 = vunpack.c.h.b16 %v386
    %v718 = vunpack.c.l.b16 %v387
    %v719 = vunpack.c.h.b16 %v387
    %v720 = vunpack.c.l.b16 %v388
    %v721 = vunpack.c.h.b16 %v388
    %v722 = vunpack.c.l.b16 %v389
    %v723 = vunpack.c.h.b16 %v389
    %v724 = vunpack.c.l.b16 %v390
    %v725 = vunpack.c.h.b16 %v390
    %v726 = vunpack.c.l.b16 %v391
    %v727 = vunpack.c.h.b16 %v391
    %v728 = vunpack.c.l.b16 %v392
    %v729 = vunpack.c.h.b16 %v392
    %v730 = vunpack.c.l.b16 %v393
    %v731 = vunpack.c.h.b16 %v393
    %v732 = vunpack.c.l.b16 %v394
    %v733 = vunpack.c.h.b16 %v394
    %v734 = vunpack.c.l.b16 %v395
    %v735 = vunpack.c.h.b16 %v395
    %v736 = vunpack.c.l.b16 %v396
    %v737 = vunpack.c.h.b16 %v396
    %v738 = vunpack.c.l.b16 %v397
    %v739 = vunpack.c.h.b16 %v397
    %v740 = vunpack.c.l.b16 %v398
    %v741 = vunpack.c.h.b16 %v398
    %v742 = vunpack.c.l.b16 %v399
    %v743 = vunpack.c.h.b16 %v399
    %v744 = vunpack.c.l.b16 %v400
    %v745 = vunpack.c.h.b16 %v400
    %v746 = vunpack.c.l.b16 %v401
    %v747 = vunpack.c.h.b16 %v401
    %v748 = vunpack.c.l.b16 %v402
    %v749 = vunpack.c.h.b16 %v402
    %v750 = vunpack.c.l.b16 %v403
    %v751 = vunpack.c.h.b16 %v403
    %v752 = vunpack.c.l.b16 %v404
    %v753 = vunpack.c.h.b16 %v404
    %v754 = vunpack.c.l.b16 %v405
    %v755 = vunpack.c.h.b16 %v405
    %v756 = vunpack.c.l.b16 %v406
    %v757 = vunpack.c.h.b16 %v406
    %v758 = vunpack.c.l.b16 %v407
    %v759 = vunpack.c.h.b16 %v407
    %v760 = vunpack.c.l.b16 %v408
    %v761 = vunpack.c.h.b16 %v408
    %v762 = vunpack.c.l.b16 %v409
    %v763 = vunpack.c.h.b16 %v409
    %v764 = vunpack.c.l.b16 %v410
    %v765 = vunpack.c.h.b16 %v410
    %v766 = vunpack.c.l.b16 %v411
    %v767 = vunpack.c.h.b16 %v411
    %v768 = vunpack.c.l.b16 %v412
    %v769 = vunpack.c.h.b16 %v412
    %v770 = vunpack.c.l.b16 %v413
    %v771 = vunpack.c.h.b16 %v413
    %v772 = vunpack.c.l.b16 %v414
    %v773 = vunpack.c.h.b16 %v414
    %v774 = vunpack.c.l.b16 %v415
    %v775 = vunpack.c.h.b16 %v415
    %v776 = vunpack.c.l.b16 %v416
    %v777 = vunpack.c.h.b16 %v416
    %v778 = vunpack.c.l.b16 %v417
    %v779 = vunpack.c.h.b16 %v417
    %v780 = vunpack.c.l.b16 %v418
    %v781 = vunpack.c.h.b16 %v418
    %v782 = vunpack.c.l.b16 %v419
    %v783 = vunpack.c.h.b16 %v419
    %v784 = vunpack.c.l.b16 %v420
    %v785 = vunpack.c.h.b16 %v420
    %v786 = vunpack.c.l.b16 %v421
    %v787 = vunpack.c.h.b16 %v421
    %v788 = vunpack.c.l.b16 %v422
    %v789 = vunpack.c.h.b16 %v422
    %v790 = vunpack.c.l.b16 %v423
    %v791 = vunpack.c.h.b16 %v423
    %v792 = vunpack.c.l.b16 %v424
    %v793 = vunpack.c.h.b16 %v424
    %v794 = vunpack.c.l.b16 %v425
    %v795 = vunpack.c.h.b16 %v425
    %v796 = vunpack.c.l.b16 %v426
    %v797 = vunpack.c.h.b16 %v426
    %v798 = vunpack.c.l.b16 %v427
    %v799 = vunpack.c.h.b16 %v427
    %v800 = vunpack.c.l.b16 %v428
    %v801 = vunpack.c.h.b16 %v428
    %v802 = vunpack.c.l.b16 %v429
    %v803 = vunpack.c.h.b16 %v429
    %v804 = vunpack.c.l.b16 %v430
    %v805 = vunpack.c.h.b16 %v430
    %v806 = vunpack.c.l.b16 %v431
    %v807 = vunpack.c.h.b16 %v431
    %v808 = vunpack.c.l.b16 %v432
    %v809 = vunpack.c.h.b16 %v432
    %v810 = vunpack.c.l.b16 %v433
    %v811 = vunpack.c.h.b16 %v433
    %v812 = vunpack.c.l.b16 %v434
    %v813 = vunpack.c.h.b16 %v434
    %v814 = vunpack.c.l.b16 %v435
    %v815 = vunpack.c.h.b16 %v435
    %v816 = vunpack.c.l.b16 %v436
    %v817 = vunpack.c.h.b16 %v436
    %v818 = vunpack.c.l.b16 %v437
    %v819 = vunpack.c.h.b16 %v437
    %v820 = vunpack.c.l.b16 %v438
    %v821 = vunpack.c.h.b16 %v438
    %v822 = vunpack.c.l.b16 %v439
    %v823 = vunpack.c.h.b16 %v439
    %v824 = vunpack.c.l.b16 %v440
    %v825 = vunpack.c.h.b16 %v440
    %v826 = vunpack.c.l.b16 %v441
    %v827 = vunpack.c.h.b16 %v441
    %v828 = vunpack.c.l.b16 %v442
    %v829 = vunpack.c.h.b16 %v442
    %v830 = vunpack.c.l.b16 %v443
    %v831 = vunpack.c.h.b16 %v443
    %v832 = vunpack.c.l.b16 %v444
    %v833 = vunpack.c.h.b16 %v444
    %v834 = vunpack.c.l.b16 %v445
    %v835 = vunpack.c.h.b16 %v445
    %v836 = vunpack.c.l.b16 %v446
    %v837 = vunpack.c.h.b16 %v446
    %v838 = vunpack.c.l.b16 %v447
    %v839 = vunpack.c.h.b16 %v447
    %v840 = vunpack.c.l.b16 %v448
    %v841 = vunpack.c.h.b16 %v448
    %v842 = vunpack.c.l.b16 %v449
    %v843 = vunpack.c.h.b16 %v449
    %v844 = vunpack.c.l.b16 %v450
    %v845 = vunpack.c.h.b16 %v450
    %v846 = vunpack.c.l.b16 %v451
    %v847 = vunpack.c.h.b16 %v451
    %v848 = vunpack.c.l.b16 %v452
    %v849 = vunpack.c.h.b16 %v452
    %v850 = vunpack.c.l.b16 %v453
    %v851 = vunpack.c.h.b16 %v453
    %v852 = vunpack.c.l.b16 %v454
    %v853 = vunpack.c.h.b16 %v454
    %v854 = vunpack.c.l.b16 %v455
    %v855 = vunpack.c.h.b16 %v455
    %v856 = vunpack.c.l.b16 %v456
    %v857 = vunpack.c.h.b16 %v456
    %v858 = vunpack.c.l.b16 %v457
    %v859 = vunpack.c.h.b16 %v457
    %v860 = vunpack.c.l.b16 %v458
    %v861 = vunpack.c.h.b16 %v458
    %v862 = vunpack.c.l.b16 %v459
    %v863 = vunpack.c.h.b16 %v459
    %v864 = vunpack.c.l.b16 %v460
    %v865 = vunpack.c.h.b16 %v460
    %v866 = vunpack.c.l.b16 %v461
    %v867 = vunpack.c.h.b16 %v461
    %v868 = vunpack.c.l.b16 %v462
    %v869 = vunpack.c.h.b16 %v462
    %v870 = vunpack.c.l.b16 %v463
    %v871 = vunpack.c.h.b16 %v463
    %v872 = vunpack.c.l.b16 %v464
    %v873 = vunpack.c.h.b16 %v464
    %v874 = vunpack.c.l.b16 %v465
    %v875 = vunpack.c.h.b16 %v465
    %v876 = vunpack.c.l.b16 %v466
    %v877 = vunpack.c.h.b16 %v466
    %v878 = vunpack.c.l.b16 %v467
    %v879 = vunpack.c.h.b16 %v467
    %v880 = vunpack.c.l.b16 %v468
    %v881 = vunpack.c.h.b16 %v468
    %v882 = vunpack.c.l.b16 %v469
    %v883 = vunpack.c.h.b16 %v469
    %v884 = vunpack.c.l.b16 %v470
    %v885 = vunpack.c.h.b16 %v470
    %v886 = vunpack.c.l.b16 %v471
    %v887 = vunpack.c.h.b16 %v471
    %v888 = vunpack.c.l.b16 %v472
    %v889 = vunpack.c.h.b16 %v472
    %v890 = vunpack.c.l.b16 %v473
    %v891 = vunpack.c.h.b16 %v473
    %v892 = vunpack.c.l.b16 %v474
    %v893 = vunpack.c.h.b16 %v474
    %v894 = vunpack.c.l.b16 %v475
    %v895 = vunpack.c.h.b16 %v475
    %v896 = vunpack.c.l.b16 %v476
    %v897 = vunpack.c.h.b16 %v476
    %v898 = vunpack.c.l.b16 %v477
    %v899 = vunpack.c.h.b16 %v477
    %v900 = vunpack.c.l.b16 %v478
    %v901 = vunpack.c.h.b16 %v478
    %v902 = vunpack.c.l.b16 %v479
    %v903 = vunpack.c.h.b16 %v479
    %v904 = vunpack.c.l.b16 %v480
    %v905 = vunpack.c.h.b16 %v480
    %v906 = vunpack.c.l.b16 %v481
    %v907 = vunpack.c.h.b16 %v481
    %v908 = vpack.c.b16 %v660, %v652
    %v909 = vpack.c.b16 %v661, %v653
    %v910 = vpack.c.b16 %v662, %v654
    %v911 = vpack.c.b16 %v663, %v655
    %v912 = vpack.c.b16 %v664, %v656
    %v913 = vpack.c.b16 %v665, %v657
    %v914 = vpack.c.b16 %v666, %v658
    %v915 = vpack.c.b16 %v667, %v659
    %v916 = vpack.c.b16 %v676, %v668
    %v917 = vpack.c.b16 %v677, %v669
    %v918 = vpack.c.b16 %v678, %v670
    %v919 = vpack.c.b16 %v679, %v671
    %v920 = vpack.c.b16 %v680, %v672
    %v921 = vpack.c.b16 %v681, %v673
    %v922 = vpack.c.b16 %v682, %v674
    %v923 = vpack.c.b16 %v683, %v675
    %v924 = vpack.c.b16 %v692, %v684
    %v925 = vpack.c.b16 %v693, %v685
    %v926 = vpack.c.b16 %v694, %v686
    %v927 = vpack.c.b16 %v695, %v687
    %v928 = vpack.c.b16 %v696, %v688
    %v929 = vpack.c.b16 %v697, %v689
    %v930 = vpack.c.b16 %v698, %v690
    %v931 = vpack.c.b16 %v699, %v691
    %v932 = vpack.c.b16 %v708, %v700
    %v933 = vpack.c.b16 %v709, %v701
    %v934 = vpack.c.b16 %v710, %v702
    %v935 = vpack.c.b16 %v711, %v703
    %v936 = vpack.c.b16 %v712, %v704
    %v937 = vpack.c.b16 %v713, %v705
    %v938 = vpack.c.b16 %v714, %v706
    %v939 = vpack.c.b16 %v715, %v707
    %v940 = vpack.c.b16 %v724, %v716
    %v941 = vpack.c.b16 %v725, %v717
    %v942 = vpack.c.b16 %v726, %v718
    %v943 = vpack.c.b16 %v727, %v719
    %v944 = vpack.c.b16 %v728, %v720
    %v945 = vpack.c.b16 %v729, %v721
    %v946 = vpack.c.b16 %v730, %v722
    %v947 = vpack.c.b16 %v731, %v723
    %v948 = vpack.c.b16 %v740, %v732
    %v949 = vpack.c.b16 %v741, %v733
    %v950 = vpack.c.b16 %v742, %v734
    %v951 = vpack.c.b16 %v743, %v735
    %v952 = vpack.c.b16 %v744, %v736
    %v953 = vpack.c.b16 %v745, %v737
    %v954 = vpack.c.b16 %v746, %v738
    %v955 = vpack.c.b16 %v747, %v739
    %v956 = vpack.c.b16 %v756, %v748
    %v957 = vpack.c.b16 %v757, %v749
    %v958 = vpack.c.b16 %v758, %v750
    %v959 = vpack.c.b16 %v759, %v751
    %v960 = vpack.c.b16 %v760, %v752
    %v961 = vpack.c.b16 %v761, %v753
    %v962 = vpack.c.b16 %v762, %v754
    %v963 = vpack.c.b16 %v763, %v755
    %v964 = vpack.c.b16 %v772, %v764
    %v965 = vpack.c.b16 %v773, %v765
    %v966 = vpack.c.b16 %v774, %v766
    %v967 = vpack.c.b16 %v775, %v767
    %v968 = vpack.c.b16 %v776, %v768
    %v969 = vpack.c.b16 %v777, %v769
    %v970 = vpack.c.b16 %v778, %v770
    %v971 = vpack.c.b16 %v779, %v771
    %v972 = vpack.c.b16 %v788, %v780
    %v973 = vpack.c.b16 %v789, %v781
    %v974 = vpack.c.b16 %v790, %v782
    %v975 = vpack.c.b16 %v791, %v783
    %v976 = vpack.c.b16 %v792, %v784
    %v977 = vpack.c.b16 %v793, %v785
    %v978 = vpack.c.b16 %v794, %v786
    %v979 = vpack.c.b16 %v795, %v787
    %v980 = vpack.c.b16 %v804, %v796
    %v981 = vpack.c.b16 %v805, %v797
    %v982 = vpack.c.b16 %v806, %v798
    %v983 = vpack.c.b16 %v807, %v799
    %v984 = vpack.c.b16 %v808, %v800
    %v985 = vpack.c.b16 %v809, %v801
    %v986 = vpack.c.b16 %v810, %v802
    %v987 = vpack.c.b16 %v811, %v803
    %v988 = vpack.c.b16 %v820, %v812
    %v989 = vpack.c.b16 %v821, %v813
    %v990 = vpack.c.b16 %v822, %v814
    %v991 = vpack.c.b16 %v823, %v815
    %v992 = vpack.c.b16 %v824, %v816
    %v993 = vpack.c.b16 %v825, %v817
    %v994 = vpack.c.b16 %v826, %v818
    %v995 = vpack.c.b16 %v827, %v819
    %v996 = vpack.c.b16 %v836, %v828
    %v997 = vpack.c.b16 %v837, %v829
    %v998 = vpack.c.b16 %v838, %v830
    %v999 = vpack.c.b16 %v839, %v831
    %v1000 = vpack.c.b16 %v840, %v832
    %v1001 = vpack.c.b16 %v841, %v833
    %v1002 = vpack.c.b16 %v842, %v834
    %v1003 = vpack.c.b16 %v843, %v835
    %v1004 = vpack.c.b16 %v852, %v844
    %v1005 = vpack.c.b16 %v853, %v845
    %v1006 = vpack.c.b16 %v854, %v846
    %v1007 = vpack.c.b16 %v855, %v847
    %v1008 = vpack.c.b16 %v856, %v848
    %v1009 = vpack.c.b16 %v857, %v849
    %v1010 = vpack.c.b16 %v858, %v850
    %v1011 = vpack.c.b16 %v859, %v851
    %v1012 = vpack.c.b16 %v868, %v860
    %v1013 = vpack.c.b16 %v869, %v861
    %v1014 = vpack.c.b16 %v870, %v862
    %v1015 = vpack.c.b16 %v871, %v863
    %v1016 = vpack.c.b16 %v872, %v864
    %v1017 = vpack.c.b16 %v873, %v865
    %v1018 = vpack.c.b16 %v874, %v866
    %v1019 = vpack.c.b16 %v875, %v867
    %v1020 = vpack.c.b16 %v884, %v876
    %v1021 = vpack.c.b16 %v885, %v877
    %v1022 = vpack.c.b16 %v886, %v878
    %v1023 = vpack.c.b16 %v887, %v879
    %v1024 = vpack.c.b16 %v888, %v880
    %v1025 = vpack.c.b16 %v889, %v881
    %v1026 = vpack.c.b16 %v890, %v882
    %v1027 = vpack.c.b16 %v891, %v883
    %v1028 = vpack.c.b16 %v900, %v892
    %v1029 = vpack.c.b16 %v901, %v893
    %v1030 = vpack.c.b16 %v902, %v894
    %v1031 = vpack.c.b16 %v903, %v895
    %v1032 = vpack.c.b16 %v904, %v896
    %v1033 = vpack.c.b16 %v905, %v897
    %v1034 = vpack.c.b16 %v906, %v898
    %v1035 = vpack.c.b16 %v907, %v899
    %1164 = vmatprep.subr.bf16.mxu0 %v909
    %1165 = vmatpush1.bf16.msra.mxu0 %v908
    %1166 = vmatprep.subr.bf16.mxu0 %v917
    %1167 = vmatpush1.bf16.msra.mxu0 %v916
    %1168 = vmatprep.subr.bf16.mxu0 %v925
    %1169 = vmatpush1.bf16.msra.mxu0 %v924
    %1170 = vmatprep.subr.bf16.mxu0 %v933
    %1171 = vmatpush1.bf16.msra.mxu0 %v932
    %1172 = vmatprep.subr.bf16.mxu0 %v941
    %1173 = vmatpush1.bf16.msra.mxu0 %v940
    %1174 = vmatprep.subr.bf16.mxu0 %v949
    %1175 = vmatpush1.bf16.msra.mxu0 %v948
    %1176 = vmatprep.subr.bf16.mxu0 %v957
    %1177 = vmatpush1.bf16.msra.mxu0 %v956
    %1178 = vmatprep.subr.bf16.mxu0 %v965
    %1179 = vmatpush1.bf16.msra.mxu0 %v964
    %1180 = vmatprep.subr.bf16.mxu0 %v973
    %1181 = vmatpush1.bf16.msra.mxu0 %v972
    %1182 = vmatprep.subr.bf16.mxu0 %v981
    %1183 = vmatpush1.bf16.msra.mxu0 %v980
    %1184 = vmatprep.subr.bf16.mxu0 %v989
    %1185 = vmatpush1.bf16.msra.mxu0 %v988
    %1186 = vmatprep.subr.bf16.mxu0 %v997
    %1187 = vmatpush1.bf16.msra.mxu0 %v996
    %1188 = vmatprep.subr.bf16.mxu0 %v1005
    %1189 = vmatpush1.bf16.msra.mxu0 %v1004
    %1190 = vmatprep.subr.bf16.mxu0 %v1013
    %1191 = vmatpush1.bf16.msra.mxu0 %v1012
    %1192 = vmatprep.subr.bf16.mxu0 %v1021
    %1193 = vmatpush1.bf16.msra.mxu0 %v1020
    %1194 = vmatprep.subr.bf16.mxu0 %v1029
    %1195 = vmatpush1.bf16.msra.mxu0 %v1028
    %1196 = vmatprep.mubr.bf16.mxu0 %v353
    %1197 = vmatmul.mubr.bf16.gmra.mrb[0].mxu0 %v352
    %v1198 = vpop.f32.mrb[0].mxu0
    %v1199 = vadd.f32 %v487, %v1198
    %v1200 = vpop.f32.mrb[0].mxu0
    %v1201 = vadd.f32 %v491, %v1200
    %v1202 = vpop.f32.mrb[0].mxu0
    %v1203 = vadd.f32 %v487, %v1202
    %v1204 = vpop.f32.mrb[0].mxu0
    %v1205 = vadd.f32 %v491, %v1204
    %1206 = vdwg.mxu0
    %1207 = vmatprep.subr.bf16.mxu0 %v911
    %1208 = vmatpush1.bf16.msra.mxu0 %v910
    %1209 = vmatprep.subr.bf16.mxu0 %v919
    %1210 = vmatpush1.bf16.msra.mxu0 %v918
    %1211 = vmatprep.subr.bf16.mxu0 %v927
    %1212 = vmatpush1.bf16.msra.mxu0 %v926
    %1213 = vmatprep.subr.bf16.mxu0 %v935
    %1214 = vmatpush1.bf16.msra.mxu0 %v934
    %1215 = vmatprep.subr.bf16.mxu0 %v943
    %1216 = vmatpush1.bf16.msra.mxu0 %v942
    %1217 = vmatprep.subr.bf16.mxu0 %v951
    %1218 = vmatpush1.bf16.msra.mxu0 %v950
    %1219 = vmatprep.subr.bf16.mxu0 %v959
    %1220 = vmatpush1.bf16.msra.mxu0 %v958
    %1221 = vmatprep.subr.bf16.mxu0 %v967
    %1222 = vmatpush1.bf16.msra.mxu0 %v966
    %1223 = vmatprep.subr.bf16.mxu0 %v975
    %1224 = vmatpush1.bf16.msra.mxu0 %v974
    %1225 = vmatprep.subr.bf16.mxu0 %v983
    %1226 = vmatpush1.bf16.msra.mxu0 %v982
    %1227 = vmatprep.subr.bf16.mxu0 %v991
    %1228 = vmatpush1.bf16.msra.mxu0 %v990
    %1229 = vmatprep.subr.bf16.mxu0 %v999
    %1230 = vmatpush1.bf16.msra.mxu0 %v998
    %1231 = vmatprep.subr.bf16.mxu0 %v1007
    %1232 = vmatpush1.bf16.msra.mxu0 %v1006
    %1233 = vmatprep.subr.bf16.mxu0 %v1015
    %1234 = vmatpush1.bf16.msra.mxu0 %v1014
    %1235 = vmatprep.subr.bf16.mxu0 %v1023
    %1236 = vmatpush1.bf16.msra.mxu0 %v1022
    %1237 = vmatprep.subr.bf16.mxu0 %v1031
    %1238 = vmatpush1.bf16.msra.mxu0 %v1030
    %1239 = vmatprep.mubr.bf16.mxu0 %v353
    %1240 = vmatmul.mubr.bf16.gmra.mrb[0].mxu0 %v352
    %v1241 = vpop.f32.mrb[0].mxu0
    %v1242 = vadd.f32 %v495, %v1241
    %v1243 = vpop.f32.mrb[0].mxu0
    %v1244 = vadd.f32 %v499, %v1243
    %v1245 = vpop.f32.mrb[0].mxu0
    %v1246 = vadd.f32 %v495, %v1245
    %v1247 = vpop.f32.mrb[0].mxu0
    %v1248 = vadd.f32 %v499, %v1247
    %1249 = vdwg.mxu0
    %1250 = vmatprep.subr.bf16.mxu0 %v913
    %1251 = vmatpush1.bf16.msra.mxu0 %v912
    %1252 = vmatprep.subr.bf16.mxu0 %v921
    %1253 = vmatpush1.bf16.msra.mxu0 %v920
    %1254 = vmatprep.subr.bf16.mxu0 %v929
    %1255 = vmatpush1.bf16.msra.mxu0 %v928
    %1256 = vmatprep.subr.bf16.mxu0 %v937
    %1257 = vmatpush1.bf16.msra.mxu0 %v936
    %1258 = vmatprep.subr.bf16.mxu0 %v945
    %1259 = vmatpush1.bf16.msra.mxu0 %v944
    %1260 = vmatprep.subr.bf16.mxu0 %v953
    %1261 = vmatpush1.bf16.msra.mxu0 %v952
    %1262 = vmatprep.subr.bf16.mxu0 %v961
    %1263 = vmatpush1.bf16.msra.mxu0 %v960
    %1264 = vmatprep.subr.bf16.mxu0 %v969
    %1265 = vmatpush1.bf16.msra.mxu0 %v968
    %1266 = vmatprep.subr.bf16.mxu0 %v977
    %1267 = vmatpush1.bf16.msra.mxu0 %v976
    %1268 = vmatprep.subr.bf16.mxu0 %v985
    %1269 = vmatpush1.bf16.msra.mxu0 %v984
    %1270 = vmatprep.subr.bf16.mxu0 %v993
    %1271 = vmatpush1.bf16.msra.mxu0 %v992
    %1272 = vmatprep.subr.bf16.mxu0 %v1001
    %1273 = vmatpush1.bf16.msra.mxu0 %v1000
    %1274 = vmatprep.subr.bf16.mxu0 %v1009
    %1275 = vmatpush1.bf16.msra.mxu0 %v1008
    %1276 = vmatprep.subr.bf16.mxu0 %v1017
    %1277 = vmatpush1.bf16.msra.mxu0 %v1016
    %1278 = vmatprep.subr.bf16.mxu0 %v1025
    %1279 = vmatpush1.bf16.msra.mxu0 %v1024
    %1280 = vmatprep.subr.bf16.mxu0 %v1033
    %1281 = vmatpush1.bf16.msra.mxu0 %v1032
    %1282 = vmatprep.mubr.bf16.mxu0 %v353
    %1283 = vmatmul.mubr.bf16.gmra.mrb[0].mxu0 %v352
    %v1284 = vpop.f32.mrb[0].mxu0
    %v1285 = vadd.f32 %v503, %v1284
    %v1286 = vpop.f32.mrb[0].mxu0
    %v1287 = vadd.f32 %v507, %v1286
    %v1288 = vpop.f32.mrb[0].mxu0
    %v1289 = vadd.f32 %v503, %v1288
    %v1290 = vpop.f32.mrb[0].mxu0
    %v1291 = vadd.f32 %v507, %v1290
    %1292 = vdwg.mxu0
    %1293 = vmatprep.subr.bf16.mxu0 %v915
    %1294 = vmatpush1.bf16.msra.mxu0 %v914
    %1295 = vmatprep.subr.bf16.mxu0 %v923
    %1296 = vmatpush1.bf16.msra.mxu0 %v922
    %1297 = vmatprep.subr.bf16.mxu0 %v931
    %1298 = vmatpush1.bf16.msra.mxu0 %v930
    %1299 = vmatprep.subr.bf16.mxu0 %v939
    %1300 = vmatpush1.bf16.msra.mxu0 %v938
    %1301 = vmatprep.subr.bf16.mxu0 %v947
    %1302 = vmatpush1.bf16.msra.mxu0 %v946
    %1303 = vmatprep.subr.bf16.mxu0 %v955
    %1304 = vmatpush1.bf16.msra.mxu0 %v954
    %1305 = vmatprep.subr.bf16.mxu0 %v963
    %1306 = vmatpush1.bf16.msra.mxu0 %v962
    %1307 = vmatprep.subr.bf16.mxu0 %v971
    %1308 = vmatpush1.bf16.msra.mxu0 %v970
    %1309 = vmatprep.subr.bf16.mxu0 %v979
    %1310 = vmatpush1.bf16.msra.mxu0 %v978
    %1311 = vmatprep.subr.bf16.mxu0 %v987
    %1312 = vmatpush1.bf16.msra.mxu0 %v986
    %1313 = vmatprep.subr.bf16.mxu0 %v995
    %1314 = vmatpush1.bf16.msra.mxu0 %v994
    %1315 = vmatprep.subr.bf16.mxu0 %v1003
    %1316 = vmatpush1.bf16.msra.mxu0 %v1002
    %1317 = vmatprep.subr.bf16.mxu0 %v1011
    %1318 = vmatpush1.bf16.msra.mxu0 %v1010
    %1319 = vmatprep.subr.bf16.mxu0 %v1019
    %1320 = vmatpush1.bf16.msra.mxu0 %v1018
    %1321 = vmatprep.subr.bf16.mxu0 %v1027
    %1322 = vmatpush1.bf16.msra.mxu0 %v1026
    %1323 = vmatprep.subr.bf16.mxu0 %v1035
    %1324 = vmatpush1.bf16.msra.mxu0 %v1034
    %1325 = vmatprep.mubr.bf16.mxu0 %v353
    %1326 = vmatmul.mubr.bf16.gmra.mrb[0].mxu0 %v352
    %v1327 = vpop.f32.mrb[0].mxu0
    %v1328 = vadd.f32 %v511, %v1327
    %v1329 = vpop.f32.mrb[0].mxu0
    %v1330 = vadd.f32 %v515, %v1329
    %v1331 = vpop.f32.mrb[0].mxu0
    %v1332 = vadd.f32 %v511, %v1331
    %v1333 = vpop.f32.mrb[0].mxu0
    %v1334 = vadd.f32 %v515, %v1333
    %1335 = vdwg.mxu0
    %v1336 = vmax.f32 %v1199, 0.0
    %v1337 = vmax.f32 %v1201, 0.0
    %v1338 = vmax.f32 %v1242, 0.0
    %v1339 = vmax.f32 %v1244, 0.0
    %v1340 = vmax.f32 %v1285, 0.0
    %v1341 = vmax.f32 %v1287, 0.0
    %v1342 = vmax.f32 %v1328, 0.0
    %v1343 = vmax.f32 %v1330, 0.0
    %v1344 = vmax.f32 %v1203, 0.0
    %v1345 = vmax.f32 %v1205, 0.0
    %v1346 = vmax.f32 %v1246, 0.0
    %v1347 = vmax.f32 %v1248, 0.0
    %v1348 = vmax.f32 %v1289, 0.0
    %v1349 = vmax.f32 %v1291, 0.0
    %v1350 = vmax.f32 %v1332, 0.0
    %v1351 = vmax.f32 %v1334, 0.0
    %v1352 = vpack.c.bf16 %v1344, %v1336
    %v1353 = vpack.c.bf16 %v1345, %v1337
    %v1354 = vpack.c.bf16 %v1346, %v1338
    %v1355 = vpack.c.bf16 %v1347, %v1339
    %v1356 = vpack.c.bf16 %v1348, %v1340
    %v1357 = vpack.c.bf16 %v1349, %v1341
    %v1358 = vpack.c.bf16 %v1350, %v1342
    %v1359 = vpack.c.bf16 %v1351, %v1343
    %v1360 = vld [vmem:[#allocation11] sm:$0xf]
    %v1361 = vld [vmem:[#allocation11 + $0x4] sm:$0xf]
    %v1362 = vld [vmem:[#allocation11 + $0x8] sm:$0xf]
    %v1363 = vld [vmem:[#allocation11 + $0xc] sm:$0xf]
    %v1364 = vld [vmem:[#allocation11 + $0x10] sm:$0xf]
    %v1365 = vld [vmem:[#allocation11 + $0x14] sm:$0xf]
    %v1366 = vld [vmem:[#allocation11 + $0x18] sm:$0xf]
    %v1367 = vld [vmem:[#allocation11 + $0x1c] sm:$0xf]
    %v1368 = vld [vmem:[#allocation11 + $0x20] sm:$0xf]
    %v1369 = vld [vmem:[#allocation11 + $0x24] sm:$0xf]
    %v1370 = vld [vmem:[#allocation11 + $0x28] sm:$0xf]
    %v1371 = vld [vmem:[#allocation11 + $0x2c] sm:$0xf]
    %v1372 = vld [vmem:[#allocation11 + $0x30] sm:$0xf]
    %v1373 = vld [vmem:[#allocation11 + $0x34] sm:$0xf]
    %v1374 = vld [vmem:[#allocation11 + $0x38] sm:$0xf]
    %v1375 = vld [vmem:[#allocation11 + $0x3c] sm:$0xf]
    %v1376 = vld [vmem:[#allocation11 + $0x40] sm:$0xf]
    %v1377 = vld [vmem:[#allocation11 + $0x44] sm:$0xf]
    %v1378 = vld [vmem:[#allocation11 + $0x48] sm:$0xf]
    %v1379 = vld [vmem:[#allocation11 + $0x4c] sm:$0xf]
    %v1380 = vld [vmem:[#allocation11 + $0x50] sm:$0xf]
    %v1381 = vld [vmem:[#allocation11 + $0x54] sm:$0xf]
    %v1382 = vld [vmem:[#allocation11 + $0x58] sm:$0xf]
    %v1383 = vld [vmem:[#allocation11 + $0x5c] sm:$0xf]
    %v1384 = vld [vmem:[#allocation11 + $0x60] sm:$0xf]
    %v1385 = vld [vmem:[#allocation11 + $0x64] sm:$0xf]
    %v1386 = vld [vmem:[#allocation11 + $0x68] sm:$0xf]
    %v1387 = vld [vmem:[#allocation11 + $0x6c] sm:$0xf]
    %v1388 = vld [vmem:[#allocation11 + $0x70] sm:$0xf]
    %v1389 = vld [vmem:[#allocation11 + $0x74] sm:$0xf]
    %v1390 = vld [vmem:[#allocation11 + $0x78] sm:$0xf]
    %v1391 = vld [vmem:[#allocation11 + $0x7c] sm:$0xf]
    %v1392 = vld [vmem:[#allocation11 + $0x80] sm:$0xf]
    %v1393 = vld [vmem:[#allocation11 + $0x84] sm:$0xf]
    %v1394 = vld [vmem:[#allocation11 + $0x88] sm:$0xf]
    %v1395 = vld [vmem:[#allocation11 + $0x8c] sm:$0xf]
    %v1396 = vld [vmem:[#allocation11 + $0x90] sm:$0xf]
    %v1397 = vld [vmem:[#allocation11 + $0x94] sm:$0xf]
    %v1398 = vld [vmem:[#allocation11 + $0x98] sm:$0xf]
    %v1399 = vld [vmem:[#allocation11 + $0x9c] sm:$0xf]
    %v1400 = vld [vmem:[#allocation11 + $0xa0] sm:$0xf]
    %v1401 = vld [vmem:[#allocation11 + $0xa4] sm:$0xf]
    %v1402 = vld [vmem:[#allocation11 + $0xa8] sm:$0xf]
    %v1403 = vld [vmem:[#allocation11 + $0xac] sm:$0xf]
    %v1404 = vld [vmem:[#allocation11 + $0xb0] sm:$0xf]
    %v1405 = vld [vmem:[#allocation11 + $0xb4] sm:$0xf]
    %v1406 = vld [vmem:[#allocation11 + $0xb8] sm:$0xf]
    %v1407 = vld [vmem:[#allocation11 + $0xbc] sm:$0xf]
    %v1408 = vld [vmem:[#allocation11 + $0xc0] sm:$0xf]
    %v1409 = vld [vmem:[#allocation11 + $0xc4] sm:$0xf]
    %v1410 = vld [vmem:[#allocation11 + $0xc8] sm:$0xf]
    %v1411 = vld [vmem:[#allocation11 + $0xcc] sm:$0xf]
    %v1412 = vld [vmem:[#allocation11 + $0xd0] sm:$0xf]
    %v1413 = vld [vmem:[#allocation11 + $0xd4] sm:$0xf]
    %v1414 = vld [vmem:[#allocation11 + $0xd8] sm:$0xf]
    %v1415 = vld [vmem:[#allocation11 + $0xdc] sm:$0xf]
    %v1416 = vld [vmem:[#allocation11 + $0xe0] sm:$0xf]
    %v1417 = vld [vmem:[#allocation11 + $0xe4] sm:$0xf]
    %v1418 = vld [vmem:[#allocation11 + $0xe8] sm:$0xf]
    %v1419 = vld [vmem:[#allocation11 + $0xec] sm:$0xf]
    %v1420 = vld [vmem:[#allocation11 + $0xf0] sm:$0xf]
    %v1421 = vld [vmem:[#allocation11 + $0xf4] sm:$0xf]
    %v1422 = vld [vmem:[#allocation11 + $0xf8] sm:$0xf]
    %v1423 = vld [vmem:[#allocation11 + $0xfc] sm:$0xf]
    %v1424 = vld [vmem:[#allocation11 + $0x100] sm:$0xf]
    %v1425 = vld [vmem:[#allocation11 + $0x104] sm:$0xf]
    %v1426 = vld [vmem:[#allocation11 + $0x108] sm:$0xf]
    %v1427 = vld [vmem:[#allocation11 + $0x10c] sm:$0xf]
    %v1428 = vld [vmem:[#allocation11 + $0x110] sm:$0xf]
    %v1429 = vld [vmem:[#allocation11 + $0x114] sm:$0xf]
    %v1430 = vld [vmem:[#allocation11 + $0x118] sm:$0xf]
    %v1431 = vld [vmem:[#allocation11 + $0x11c] sm:$0xf]
    %v1432 = vld [vmem:[#allocation11 + $0x120] sm:$0xf]
    %v1433 = vld [vmem:[#allocation11 + $0x124] sm:$0xf]
    %v1434 = vld [vmem:[#allocation11 + $0x128] sm:$0xf]
    %v1435 = vld [vmem:[#allocation11 + $0x12c] sm:$0xf]
    %v1436 = vld [vmem:[#allocation11 + $0x130] sm:$0xf]
    %v1437 = vld [vmem:[#allocation11 + $0x134] sm:$0xf]
    %v1438 = vld [vmem:[#allocation11 + $0x138] sm:$0xf]
    %v1439 = vld [vmem:[#allocation11 + $0x13c] sm:$0xf]
    %v1440 = vld [vmem:[#allocation11 + $0x140] sm:$0xf]
    %v1441 = vld [vmem:[#allocation11 + $0x144] sm:$0xf]
    %v1442 = vld [vmem:[#allocation11 + $0x148] sm:$0xf]
    %v1443 = vld [vmem:[#allocation11 + $0x14c] sm:$0xf]
    %v1444 = vld [vmem:[#allocation11 + $0x150] sm:$0xf]
    %v1445 = vld [vmem:[#allocation11 + $0x154] sm:$0xf]
    %v1446 = vld [vmem:[#allocation11 + $0x158] sm:$0xf]
    %v1447 = vld [vmem:[#allocation11 + $0x15c] sm:$0xf]
    %v1448 = vld [vmem:[#allocation11 + $0x160] sm:$0xf]
    %v1449 = vld [vmem:[#allocation11 + $0x164] sm:$0xf]
    %v1450 = vld [vmem:[#allocation11 + $0x168] sm:$0xf]
    %v1451 = vld [vmem:[#allocation11 + $0x16c] sm:$0xf]
    %v1452 = vld [vmem:[#allocation11 + $0x170] sm:$0xf]
    %v1453 = vld [vmem:[#allocation11 + $0x174] sm:$0xf]
    %v1454 = vld [vmem:[#allocation11 + $0x178] sm:$0xf]
    %v1455 = vld [vmem:[#allocation11 + $0x17c] sm:$0xf]
    %v1456 = vld [vmem:[#allocation11 + $0x180] sm:$0xf]
    %v1457 = vld [vmem:[#allocation11 + $0x184] sm:$0xf]
    %v1458 = vld [vmem:[#allocation11 + $0x188] sm:$0xf]
    %v1459 = vld [vmem:[#allocation11 + $0x18c] sm:$0xf]
    %v1460 = vld [vmem:[#allocation11 + $0x190] sm:$0xf]
    %v1461 = vld [vmem:[#allocation11 + $0x194] sm:$0xf]
    %v1462 = vld [vmem:[#allocation11 + $0x198] sm:$0xf]
    %v1463 = vld [vmem:[#allocation11 + $0x19c] sm:$0xf]
    %v1464 = vld [vmem:[#allocation11 + $0x1a0] sm:$0xf]
    %v1465 = vld [vmem:[#allocation11 + $0x1a4] sm:$0xf]
    %v1466 = vld [vmem:[#allocation11 + $0x1a8] sm:$0xf]
    %v1467 = vld [vmem:[#allocation11 + $0x1ac] sm:$0xf]
    %v1468 = vld [vmem:[#allocation11 + $0x1b0] sm:$0xf]
    %v1469 = vld [vmem:[#allocation11 + $0x1b4] sm:$0xf]
    %v1470 = vld [vmem:[#allocation11 + $0x1b8] sm:$0xf]
    %v1471 = vld [vmem:[#allocation11 + $0x1bc] sm:$0xf]
    %v1472 = vld [vmem:[#allocation11 + $0x1c0] sm:$0xf]
    %v1473 = vld [vmem:[#allocation11 + $0x1c4] sm:$0xf]
    %v1474 = vld [vmem:[#allocation11 + $0x1c8] sm:$0xf]
    %v1475 = vld [vmem:[#allocation11 + $0x1cc] sm:$0xf]
    %v1476 = vld [vmem:[#allocation11 + $0x1d0] sm:$0xf]
    %v1477 = vld [vmem:[#allocation11 + $0x1d4] sm:$0xf]
    %v1478 = vld [vmem:[#allocation11 + $0x1d8] sm:$0xf]
    %v1479 = vld [vmem:[#allocation11 + $0x1dc] sm:$0xf]
    %v1480 = vld [vmem:[#allocation11 + $0x1e0] sm:$0xf]
    %v1481 = vld [vmem:[#allocation11 + $0x1e4] sm:$0xf]
    %v1482 = vld [vmem:[#allocation11 + $0x1e8] sm:$0xf]
    %v1483 = vld [vmem:[#allocation11 + $0x1ec] sm:$0xf]
    %v1484 = vld [vmem:[#allocation11 + $0x1f0] sm:$0xf]
    %v1485 = vld [vmem:[#allocation11 + $0x1f4] sm:$0xf]
    %v1486 = vld [vmem:[#allocation11 + $0x1f8] sm:$0xf]
    %v1487 = vld [vmem:[#allocation11 + $0x1fc] sm:$0xf]
    %v1488 = vld [vmem:[#allocation13] sm:$0x1]
    %v1490 = vlaneseq
    %v1491 = vshrl.u32 %v1490, 7
    %v1492 = vsub.s32 0, %v1491
    %v1493 = vrot.slane %v1488, %v1492
    %v1623 = vunpack.c.l.b16 %v1360
    %v1624 = vunpack.c.l.b16 %v1361
    %v1625 = vunpack.c.l.b16 %v1362
    %v1626 = vunpack.c.l.b16 %v1363
    %v1627 = vunpack.c.l.b16 %v1364
    %v1628 = vunpack.c.l.b16 %v1365
    %v1629 = vunpack.c.l.b16 %v1366
    %v1630 = vunpack.c.l.b16 %v1367
    %v1631 = vunpack.c.l.b16 %v1368
    %v1632 = vunpack.c.l.b16 %v1369
    %v1633 = vunpack.c.l.b16 %v1370
    %v1634 = vunpack.c.l.b16 %v1371
    %v1635 = vunpack.c.l.b16 %v1372
    %v1636 = vunpack.c.l.b16 %v1373
    %v1637 = vunpack.c.l.b16 %v1374
    %v1638 = vunpack.c.l.b16 %v1375
    %v1639 = vunpack.c.l.b16 %v1376
    %v1640 = vunpack.c.l.b16 %v1377
    %v1641 = vunpack.c.l.b16 %v1378
    %v1642 = vunpack.c.l.b16 %v1379
    %v1643 = vunpack.c.l.b16 %v1380
    %v1644 = vunpack.c.l.b16 %v1381
    %v1645 = vunpack.c.l.b16 %v1382
    %v1646 = vunpack.c.l.b16 %v1383
    %v1647 = vunpack.c.l.b16 %v1384
    %v1648 = vunpack.c.l.b16 %v1385
    %v1649 = vunpack.c.l.b16 %v1386
    %v1650 = vunpack.c.l.b16 %v1387
    %v1651 = vunpack.c.l.b16 %v1388
    %v1652 = vunpack.c.l.b16 %v1389
    %v1653 = vunpack.c.l.b16 %v1390
    %v1654 = vunpack.c.l.b16 %v1391
    %v1655 = vunpack.c.l.b16 %v1392
    %v1656 = vunpack.c.l.b16 %v1393
    %v1657 = vunpack.c.l.b16 %v1394
    %v1658 = vunpack.c.l.b16 %v1395
    %v1659 = vunpack.c.l.b16 %v1396
    %v1660 = vunpack.c.l.b16 %v1397
    %v1661 = vunpack.c.l.b16 %v1398
    %v1662 = vunpack.c.l.b16 %v1399
    %v1663 = vunpack.c.l.b16 %v1400
    %v1664 = vunpack.c.l.b16 %v1401
    %v1665 = vunpack.c.l.b16 %v1402
    %v1666 = vunpack.c.l.b16 %v1403
    %v1667 = vunpack.c.l.b16 %v1404
    %v1668 = vunpack.c.l.b16 %v1405
    %v1669 = vunpack.c.l.b16 %v1406
    %v1670 = vunpack.c.l.b16 %v1407
    %v1671 = vunpack.c.l.b16 %v1408
    %v1672 = vunpack.c.l.b16 %v1409
    %v1673 = vunpack.c.l.b16 %v1410
    %v1674 = vunpack.c.l.b16 %v1411
    %v1675 = vunpack.c.l.b16 %v1412
    %v1676 = vunpack.c.l.b16 %v1413
    %v1677 = vunpack.c.l.b16 %v1414
    %v1678 = vunpack.c.l.b16 %v1415
    %v1679 = vunpack.c.l.b16 %v1416
    %v1680 = vunpack.c.l.b16 %v1417
    %v1681 = vunpack.c.l.b16 %v1418
    %v1682 = vunpack.c.l.b16 %v1419
    %v1683 = vunpack.c.l.b16 %v1420
    %v1684 = vunpack.c.l.b16 %v1421
    %v1685 = vunpack.c.l.b16 %v1422
    %v1686 = vunpack.c.l.b16 %v1423
    %v1687 = vunpack.c.l.b16 %v1424
    %v1688 = vunpack.c.l.b16 %v1425
    %v1689 = vunpack.c.l.b16 %v1426
    %v1690 = vunpack.c.l.b16 %v1427
    %v1691 = vunpack.c.l.b16 %v1428
    %v1692 = vunpack.c.l.b16 %v1429
    %v1693 = vunpack.c.l.b16 %v1430
    %v1694 = vunpack.c.l.b16 %v1431
    %v1695 = vunpack.c.l.b16 %v1432
    %v1696 = vunpack.c.l.b16 %v1433
    %v1697 = vunpack.c.l.b16 %v1434
    %v1698 = vunpack.c.l.b16 %v1435
    %v1699 = vunpack.c.l.b16 %v1436
    %v1700 = vunpack.c.l.b16 %v1437
    %v1701 = vunpack.c.l.b16 %v1438
    %v1702 = vunpack.c.l.b16 %v1439
    %v1703 = vunpack.c.l.b16 %v1440
    %v1704 = vunpack.c.l.b16 %v1441
    %v1705 = vunpack.c.l.b16 %v1442
    %v1706 = vunpack.c.l.b16 %v1443
    %v1707 = vunpack.c.l.b16 %v1444
    %v1708 = vunpack.c.l.b16 %v1445
    %v1709 = vunpack.c.l.b16 %v1446
    %v1710 = vunpack.c.l.b16 %v1447
    %v1711 = vunpack.c.l.b16 %v1448
    %v1712 = vunpack.c.l.b16 %v1449
    %v1713 = vunpack.c.l.b16 %v1450
    %v1714 = vunpack.c.l.b16 %v1451
    %v1715 = vunpack.c.l.b16 %v1452
    %v1716 = vunpack.c.l.b16 %v1453
    %v1717 = vunpack.c.l.b16 %v1454
    %v1718 = vunpack.c.l.b16 %v1455
    %v1719 = vunpack.c.l.b16 %v1456
    %v1720 = vunpack.c.l.b16 %v1457
    %v1721 = vunpack.c.l.b16 %v1458
    %v1722 = vunpack.c.l.b16 %v1459
    %v1723 = vunpack.c.l.b16 %v1460
    %v1724 = vunpack.c.l.b16 %v1461
    %v1725 = vunpack.c.l.b16 %v1462
    %v1726 = vunpack.c.l.b16 %v1463
    %v1727 = vunpack.c.l.b16 %v1464
    %v1728 = vunpack.c.l.b16 %v1465
    %v1729 = vunpack.c.l.b16 %v1466
    %v1730 = vunpack.c.l.b16 %v1467
    %v1731 = vunpack.c.l.b16 %v1468
    %v1732 = vunpack.c.l.b16 %v1469
    %v1733 = vunpack.c.l.b16 %v1470
    %v1734 = vunpack.c.l.b16 %v1471
    %v1735 = vunpack.c.l.b16 %v1472
    %v1736 = vunpack.c.l.b16 %v1473
    %v1737 = vunpack.c.l.b16 %v1474
    %v1738 = vunpack.c.l.b16 %v1475
    %v1739 = vunpack.c.l.b16 %v1476
    %v1740 = vunpack.c.l.b16 %v1477
    %v1741 = vunpack.c.l.b16 %v1478
    %v1742 = vunpack.c.l.b16 %v1479
    %v1743 = vunpack.c.l.b16 %v1480
    %v1744 = vunpack.c.l.b16 %v1481
    %v1745 = vunpack.c.l.b16 %v1482
    %v1746 = vunpack.c.l.b16 %v1483
    %v1747 = vunpack.c.l.b16 %v1484
    %v1748 = vunpack.c.l.b16 %v1485
    %v1749 = vunpack.c.l.b16 %v1486
    %v1750 = vunpack.c.l.b16 %v1487
    %v1751 = vpack.c.b16 %v1624, %v1623
    %v1752 = vpack.c.b16 %v1626, %v1625
    %v1753 = vpack.c.b16 %v1628, %v1627
    %v1754 = vpack.c.b16 %v1630, %v1629
    %v1755 = vpack.c.b16 %v1632, %v1631
    %v1756 = vpack.c.b16 %v1634, %v1633
    %v1757 = vpack.c.b16 %v1636, %v1635
    %v1758 = vpack.c.b16 %v1638, %v1637
    %v1759 = vpack.c.b16 %v1640, %v1639
    %v1760 = vpack.c.b16 %v1642, %v1641
    %v1761 = vpack.c.b16 %v1644, %v1643
    %v1762 = vpack.c.b16 %v1646, %v1645
    %v1763 = vpack.c.b16 %v1648, %v1647
    %v1764 = vpack.c.b16 %v1650, %v1649
    %v1765 = vpack.c.b16 %v1652, %v1651
    %v1766 = vpack.c.b16 %v1654, %v1653
    %v1767 = vpack.c.b16 %v1656, %v1655
    %v1768 = vpack.c.b16 %v1658, %v1657
    %v1769 = vpack.c.b16 %v1660, %v1659
    %v1770 = vpack.c.b16 %v1662, %v1661
    %v1771 = vpack.c.b16 %v1664, %v1663
    %v1772 = vpack.c.b16 %v1666, %v1665
    %v1773 = vpack.c.b16 %v1668, %v1667
    %v1774 = vpack.c.b16 %v1670, %v1669
    %v1775 = vpack.c.b16 %v1672, %v1671
    %v1776 = vpack.c.b16 %v1674, %v1673
    %v1777 = vpack.c.b16 %v1676, %v1675
    %v1778 = vpack.c.b16 %v1678, %v1677
    %v1779 = vpack.c.b16 %v1680, %v1679
    %v1780 = vpack.c.b16 %v1682, %v1681
    %v1781 = vpack.c.b16 %v1684, %v1683
    %v1782 = vpack.c.b16 %v1686, %v1685
    %v1783 = vpack.c.b16 %v1688, %v1687
    %v1784 = vpack.c.b16 %v1690, %v1689
    %v1785 = vpack.c.b16 %v1692, %v1691
    %v1786 = vpack.c.b16 %v1694, %v1693
    %v1787 = vpack.c.b16 %v1696, %v1695
    %v1788 = vpack.c.b16 %v1698, %v1697
    %v1789 = vpack.c.b16 %v1700, %v1699
    %v1790 = vpack.c.b16 %v1702, %v1701
    %v1791 = vpack.c.b16 %v1704, %v1703
    %v1792 = vpack.c.b16 %v1706, %v1705
    %v1793 = vpack.c.b16 %v1708, %v1707
    %v1794 = vpack.c.b16 %v1710, %v1709
    %v1795 = vpack.c.b16 %v1712, %v1711
    %v1796 = vpack.c.b16 %v1714, %v1713
    %v1797 = vpack.c.b16 %v1716, %v1715
    %v1798 = vpack.c.b16 %v1718, %v1717
    %v1799 = vpack.c.b16 %v1720, %v1719
    %v1800 = vpack.c.b16 %v1722, %v1721
    %v1801 = vpack.c.b16 %v1724, %v1723
    %v1802 = vpack.c.b16 %v1726, %v1725
    %v1803 = vpack.c.b16 %v1728, %v1727
    %v1804 = vpack.c.b16 %v1730, %v1729
    %v1805 = vpack.c.b16 %v1732, %v1731
    %v1806 = vpack.c.b16 %v1734, %v1733
    %v1807 = vpack.c.b16 %v1736, %v1735
    %v1808 = vpack.c.b16 %v1738, %v1737
    %v1809 = vpack.c.b16 %v1740, %v1739
    %v1810 = vpack.c.b16 %v1742, %v1741
    %v1811 = vpack.c.b16 %v1744, %v1743
    %v1812 = vpack.c.b16 %v1746, %v1745
    %v1813 = vpack.c.b16 %v1748, %v1747
    %v1814 = vpack.c.b16 %v1750, %v1749
    %1879 = vmatprep.subr.bf16.mxu0 0
    %1880 = vmatpush1.bf16.msra.mxu0 %v1751
    %1881 = vmatprep.subr.bf16.mxu0 0
    %1882 = vmatpush1.bf16.msra.mxu0 %v1752
    %1883 = vmatprep.subr.bf16.mxu0 0
    %1884 = vmatpush1.bf16.msra.mxu0 %v1753
    %1885 = vmatprep.subr.bf16.mxu0 0
    %1886 = vmatpush1.bf16.msra.mxu0 %v1754
    %1887 = vmatprep.subr.bf16.mxu0 0
    %1888 = vmatpush1.bf16.msra.mxu0 %v1755
    %1889 = vmatprep.subr.bf16.mxu0 0
    %1890 = vmatpush1.bf16.msra.mxu0 %v1756
    %1891 = vmatprep.subr.bf16.mxu0 0
    %1892 = vmatpush1.bf16.msra.mxu0 %v1757
    %1893 = vmatprep.subr.bf16.mxu0 0
    %1894 = vmatpush1.bf16.msra.mxu0 %v1758
    %1895 = vmatprep.subr.bf16.mxu0 0
    %1896 = vmatpush1.bf16.msra.mxu0 %v1759
    %1897 = vmatprep.subr.bf16.mxu0 0
    %1898 = vmatpush1.bf16.msra.mxu0 %v1760
    %1899 = vmatprep.subr.bf16.mxu0 0
    %1900 = vmatpush1.bf16.msra.mxu0 %v1761
    %1901 = vmatprep.subr.bf16.mxu0 0
    %1902 = vmatpush1.bf16.msra.mxu0 %v1762
    %1903 = vmatprep.subr.bf16.mxu0 0
    %1904 = vmatpush1.bf16.msra.mxu0 %v1763
    %1905 = vmatprep.subr.bf16.mxu0 0
    %1906 = vmatpush1.bf16.msra.mxu0 %v1764
    %1907 = vmatprep.subr.bf16.mxu0 0
    %1908 = vmatpush1.bf16.msra.mxu0 %v1765
    %1909 = vmatprep.subr.bf16.mxu0 0
    %1910 = vmatpush1.bf16.msra.mxu0 %v1766
    %1911 = vmatprep.mubr.bf16.mxu0 %v1353
    %1912 = vmatmul.mubr.bf16.gmra.mrb[0].mxu0 %v1352
    %v1913 = vpop.f32.mrb[0].mxu0
    %v1914 = vadd.f32 %v1493, %v1913
    %v1915 = vpop.f32.mrb[0].mxu0
    %v1916 = vpop.f32.mrb[0].mxu0
    %v1917 = vadd.f32 %v1493, %v1916
    %v1918 = vpop.f32.mrb[0].mxu0
    %1919 = vdwg.mxu0
    %1920 = vmatprep.subr.bf16.mxu0 0
    %1921 = vmatpush1.bf16.msra.mxu0 %v1767
    %1922 = vmatprep.subr.bf16.mxu0 0
    %1923 = vmatpush1.bf16.msra.mxu0 %v1768
    %1924 = vmatprep.subr.bf16.mxu0 0
    %1925 = vmatpush1.bf16.msra.mxu0 %v1769
    %1926 = vmatprep.subr.bf16.mxu0 0
    %1927 = vmatpush1.bf16.msra.mxu0 %v1770
    %1928 = vmatprep.subr.bf16.mxu0 0
    %1929 = vmatpush1.bf16.msra.mxu0 %v1771
    %1930 = vmatprep.subr.bf16.mxu0 0
    %1931 = vmatpush1.bf16.msra.mxu0 %v1772
    %1932 = vmatprep.subr.bf16.mxu0 0
    %1933 = vmatpush1.bf16.msra.mxu0 %v1773
    %1934 = vmatprep.subr.bf16.mxu0 0
    %1935 = vmatpush1.bf16.msra.mxu0 %v1774
    %1936 = vmatprep.subr.bf16.mxu0 0
    %1937 = vmatpush1.bf16.msra.mxu0 %v1775
    %1938 = vmatprep.subr.bf16.mxu0 0
    %1939 = vmatpush1.bf16.msra.mxu0 %v1776
    %1940 = vmatprep.subr.bf16.mxu0 0
    %1941 = vmatpush1.bf16.msra.mxu0 %v1777
    %1942 = vmatprep.subr.bf16.mxu0 0
    %1943 = vmatpush1.bf16.msra.mxu0 %v1778
    %1944 = vmatprep.subr.bf16.mxu0 0
    %1945 = vmatpush1.bf16.msra.mxu0 %v1779
    %1946 = vmatprep.subr.bf16.mxu0 0
    %1947 = vmatpush1.bf16.msra.mxu0 %v1780
    %1948 = vmatprep.subr.bf16.mxu0 0
    %1949 = vmatpush1.bf16.msra.mxu0 %v1781
    %1950 = vmatprep.subr.bf16.mxu0 0
    %1951 = vmatpush1.bf16.msra.mxu0 %v1782
    %1952 = vmatprep.mubr.bf16.mxu0 %v1355
    %1953 = vmatmul.mubr.bf16.gmra.mrb[0].mxu0 %v1354
    %v1954 = vpop.f32.mrb[0].mxu0
    %v1955 = vadd.f32 %v1914, %v1954
    %v1956 = vpop.f32.mrb[0].mxu0
    %v1957 = vpop.f32.mrb[0].mxu0
    %v1958 = vadd.f32 %v1917, %v1957
    %v1959 = vpop.f32.mrb[0].mxu0
    %1960 = vdwg.mxu0
    %1961 = vmatprep.subr.bf16.mxu0 0
    %1962 = vmatpush1.bf16.msra.mxu0 %v1783
    %1963 = vmatprep.subr.bf16.mxu0 0
    %1964 = vmatpush1.bf16.msra.mxu0 %v1784
    %1965 = vmatprep.subr.bf16.mxu0 0
    %1966 = vmatpush1.bf16.msra.mxu0 %v1785
    %1967 = vmatprep.subr.bf16.mxu0 0
    %1968 = vmatpush1.bf16.msra.mxu0 %v1786
    %1969 = vmatprep.subr.bf16.mxu0 0
    %1970 = vmatpush1.bf16.msra.mxu0 %v1787
    %1971 = vmatprep.subr.bf16.mxu0 0
    %1972 = vmatpush1.bf16.msra.mxu0 %v1788
    %1973 = vmatprep.subr.bf16.mxu0 0
    %1974 = vmatpush1.bf16.msra.mxu0 %v1789
    %1975 = vmatprep.subr.bf16.mxu0 0
    %1976 = vmatpush1.bf16.msra.mxu0 %v1790
    %1977 = vmatprep.subr.bf16.mxu0 0
    %1978 = vmatpush1.bf16.msra.mxu0 %v1791
    %1979 = vmatprep.subr.bf16.mxu0 0
    %1980 = vmatpush1.bf16.msra.mxu0 %v1792
    %1981 = vmatprep.subr.bf16.mxu0 0
    %1982 = vmatpush1.bf16.msra.mxu0 %v1793
    %1983 = vmatprep.subr.bf16.mxu0 0
    %1984 = vmatpush1.bf16.msra.mxu0 %v1794
    %1985 = vmatprep.subr.bf16.mxu0 0
    %1986 = vmatpush1.bf16.msra.mxu0 %v1795
    %1987 = vmatprep.subr.bf16.mxu0 0
    %1988 = vmatpush1.bf16.msra.mxu0 %v1796
    %1989 = vmatprep.subr.bf16.mxu0 0
    %1990 = vmatpush1.bf16.msra.mxu0 %v1797
    %1991 = vmatprep.subr.bf16.mxu0 0
    %1992 = vmatpush1.bf16.msra.mxu0 %v1798
    %1993 = vmatprep.mubr.bf16.mxu0 %v1357
    %1994 = vmatmul.mubr.bf16.gmra.mrb[0].mxu0 %v1356
    %v1995 = vpop.f32.mrb[0].mxu0
    %v1996 = vadd.f32 %v1955, %v1995
    %v1997 = vpop.f32.mrb[0].mxu0
    %v1998 = vpop.f32.mrb[0].mxu0
    %v1999 = vadd.f32 %v1958, %v1998
    %v2000 = vpop.f32.mrb[0].mxu0
    %2001 = vdwg.mxu0
    %2002 = vmatprep.subr.bf16.mxu0 0
    %2003 = vmatpush1.bf16.msra.mxu0 %v1799
    %2004 = vmatprep.subr.bf16.mxu0 0
    %2005 = vmatpush1.bf16.msra.mxu0 %v1800
    %2006 = vmatprep.subr.bf16.mxu0 0
    %2007 = vmatpush1.bf16.msra.mxu0 %v1801
    %2008 = vmatprep.subr.bf16.mxu0 0
    %2009 = vmatpush1.bf16.msra.mxu0 %v1802
    %2010 = vmatprep.subr.bf16.mxu0 0
    %2011 = vmatpush1.bf16.msra.mxu0 %v1803
    %2012 = vmatprep.subr.bf16.mxu0 0
    %2013 = vmatpush1.bf16.msra.mxu0 %v1804
    %2014 = vmatprep.subr.bf16.mxu0 0
    %2015 = vmatpush1.bf16.msra.mxu0 %v1805
    %2016 = vmatprep.subr.bf16.mxu0 0
    %2017 = vmatpush1.bf16.msra.mxu0 %v1806
    %2018 = vmatprep.subr.bf16.mxu0 0
    %2019 = vmatpush1.bf16.msra.mxu0 %v1807
    %2020 = vmatprep.subr.bf16.mxu0 0
    %2021 = vmatpush1.bf16.msra.mxu0 %v1808
    %2022 = vmatprep.subr.bf16.mxu0 0
    %2023 = vmatpush1.bf16.msra.mxu0 %v1809
    %2024 = vmatprep.subr.bf16.mxu0 0
    %2025 = vmatpush1.bf16.msra.mxu0 %v1810
    %2026 = vmatprep.subr.bf16.mxu0 0
    %2027 = vmatpush1.bf16.msra.mxu0 %v1811
    %2028 = vmatprep.subr.bf16.mxu0 0
    %2029 = vmatpush1.bf16.msra.mxu0 %v1812
    %2030 = vmatprep.subr.bf16.mxu0 0
    %2031 = vmatpush1.bf16.msra.mxu0 %v1813
    %2032 = vmatprep.subr.bf16.mxu0 0
    %2033 = vmatpush1.bf16.msra.mxu0 %v1814
    %2034 = vmatprep.mubr.bf16.mxu0 %v1359
    %2035 = vmatmul.mubr.bf16.gmra.mrb[0].mxu0 %v1358
    %v2036 = vpop.f32.mrb[0].mxu0
    %v2037 = vadd.f32 %v1996, %v2036
    %v2038 = vpop.f32.mrb[0].mxu0
    %v2039 = vpop.f32.mrb[0].mxu0
    %v2040 = vadd.f32 %v1999, %v2039
    %v2041 = vpop.f32.mrb[0].mxu0
    %2042 = vdwg.mxu0
    %v2043 = vmax.f32 %v2037, 0.0
    %v2044 = vmax.f32 %v2040, 0.0
    %2045 = vst [vmem:[#allocation14] sm:$0xff] %v2043
    %2046 = vst [vmem:[#allocation14 + $0x8] sm:$0xff] %v2044
    // Predicated region
    $region66: #{classifier_forward.1} parent=1 // pred_check
      _
    $region67: #{classifier_forward.1} parent=1 // pred_check_branch
      %2048 = sbr.rel (0) target = $region69
    $region68: #{classifier_forward.1} parent=1 // pred_region
      %s2050 = ssub.s32 256, 256
      %2051 = vsyncadd [#allocation4], %s2050
      %s2052 = sshll.u32 [#allocation14], 4
      %s2053 = int_to_ptr.vmem [resolvable:$true] %s2052
      %2058 = dma.vmem_to_hbm [thread:$0]  %s2053, 256, %s9, [#allocation4], 128, 128, 8
    $region69: #{classifier_forward.1} parent=1 // pred_fallthru
      _
    // Predicated region
    $region70: #{classifier_forward.1} parent=1 // pred_check
      _
    $region71: #{classifier_forward.1} parent=1 // pred_check_branch
      %2060 = sbr.rel (0) target = $region73
    $region72: #{classifier_forward.1} parent=1 // pred_region
      %2061 = dma.done [#allocation4], 256
    $region73: #{classifier_forward.1} parent=1 // pred_fallthru
      _
    %2062 = vsyncpa [#allocation3], 1
    %2063 = vsyncpa [#allocation6], 1
    %2064 = vsyncpa [#allocation9], 1
    %2065 = vsyncpa [#allocation12], 1
    %2066 = vsyncpa [#allocation4], 1

</llo_original>
